<compile_context>
chip_gen: v7x
topology: tpu7x:2x2x1
jax: 0.10.0
libtpu: 0.0.40
codegen_flags: <defaults>
</compile_context>

<pallas_src>
import jax
import jax.numpy as jnp
from jax.experimental import pallas as pl
from jax.experimental.pallas import tpu as pltpu

# ---------------- problem configuration (small, consistent with the module) --
N, CIN, H, W = 2, 4, 16, 16          # input  (NCHW)
COUT, KH, KW = 8, 3, 3               # Conv2d(in=4, out=8, kernel_size=3)
STRIDE, PAD = 1, 0                   # defaults
HO = (H + 2 * PAD - KH) // STRIDE + 1            # 14
WO = (W + 2 * PAD - KW) // STRIDE + 1            # 14
HW = H * W                                       # 256 (= 2 x 128, lane dense)
NTAPS = KH * KW                                  # 9


# ------------------------------- Pallas kernel -------------------------------
def _newmod2_kernel(x_ref, w_ref, b_ref, relu_ref):
    # x_ref    : (N, CIN, H*W)       NCHW with spatial flattened onto lanes
    # w_ref    : (KH*KW, COUT, CIN)  tap s = kh*KW + kw -> (COUT, CIN) matrix
    # b_ref    : (COUT, 1)
    # relu_ref : (N, COUT, H*W)      relu(conv(x)+b) on the full 16x16 grid;
    #                                the valid 14x14 window is sliced in the
    #                                wrapper (garbage lanes never escape).
    bias = b_ref[...]                                  # (COUT, 1), lane-bcast
    for n in range(N):                                 # static unroll, N = 2
        xn = x_ref[n]                                  # (CIN, 256) lane-dense
        acc = jnp.zeros((COUT, HW), jnp.float32)
        for kh in range(KH):                           # 9 taps: roll + matmul
            for kw in range(KW):
                d = kh * W + kw                        # lane shift of this tap
                # rolled[c, q] = xn[c, q + d]  (circular; wrap only touches
                # positions outside the valid 14x14 output window).
                xs = xn if d == 0 else pltpu.roll(xn, shift=HW - d, axis=1)
                acc = acc + jnp.dot(w_ref[kh * KW + kw], xs,
                                    preferred_element_type=jnp.float32)
        # Tagger is identity in the forward pass; bias + ReLU epilogue.
        relu_ref[n] = jnp.maximum(acc + bias, 0.0)


def newmod2_forward(x_nchw, w_oihw, bias):
    """Returns (statsOuts[0], statsNonlinearOuts[0]) in NCHW layout."""
    # Free row-major reshape (no transpose): NCHW -> (N, CIN, H*W).
    x_lanes = x_nchw.reshape(N, CIN, HW)
    # OIHW -> (KH*KW, COUT, CIN): one (COUT, CIN) matrix per tap (tiny, ~1 KB).
    w_taps = jnp.transpose(w_oihw, (2, 3, 0, 1)).reshape(NTAPS, COUT, CIN)
    b_col = bias.reshape(COUT, 1)

    flops = 2 * N * COUT * HW * NTAPS * CIN                 # ~2.9e5
    bytes_accessed = 4 * (N * CIN * HW + NTAPS * COUT * CIN
                          + COUT + N * COUT * HW)           # ~2.6e4

    relu_full = pl.pallas_call(
        _newmod2_kernel,
        out_shape=jax.ShapeDtypeStruct((N, COUT, HW), jnp.float32),
        in_specs=[
            pl.BlockSpec(memory_space=pltpu.MemorySpace.VMEM),
            pl.BlockSpec(memory_space=pltpu.MemorySpace.VMEM),
            pl.BlockSpec(memory_space=pltpu.MemorySpace.VMEM),
        ],
        out_specs=pl.BlockSpec(memory_space=pltpu.MemorySpace.VMEM),
        cost_estimate=pl.CostEstimate(flops=flops, transcendentals=0,
                                      bytes_accessed=bytes_accessed),
    )(x_lanes, w_taps, b_col)

    # Free row-major reshape back to the 16x16 grid, then slice the valid
    # 14x14 window (padded/wrapped lanes are discarded here, before any
    # consumer could reduce over the spatial axis).
    relu_grid = relu_full.reshape(N, COUT, H, W)
    stats_nonlinear_out = relu_grid[:, :, :HO, :WO]         # (N, COUT, 14, 14)
    # noForward.forward multiplies by 0; the result is a constant, so it is
    # synthesized here instead of being DMA'd back from the kernel.
    # (Diverges from PyTorch only if relu(conv(x)) held +inf -> inf*0 = NaN.)
    stats_out = jnp.zeros_like(stats_nonlinear_out)
    return stats_out, stats_nonlinear_out


# ------------------------------------ main ------------------------------------
if __name__ == "__main__":
    key = jax.random.PRNGKey(0)
    kx, kw, kb = jax.random.split(key, 3)

    x = jax.random.normal(kx, (N, CIN, H, W), dtype=jnp.float32)
    # Deterministic parameter init (Conv2d-style uniform fan-in bound).
    fan_in = CIN * KH * KW
    bound = 1.0 / (fan_in ** 0.5)
    w = jax.random.uniform(kw, (COUT, CIN, KH, KW), jnp.float32, -bound, bound)
    b = jax.random.uniform(kb, (COUT,), jnp.float32, -bound, bound)

    fwd = jax.jit(newmod2_forward)
    stats_out, relu_out = fwd(x, w, b)
    stats_out = jax.block_until_ready(stats_out)
    relu_out = jax.block_until_ready(relu_out)

    # Pure-JAX reference for the hot path (conv + bias + relu).
    ref_conv = jax.lax.conv_general_dilated(
        x, w, window_strides=(STRIDE, STRIDE), padding="VALID",
        dimension_numbers=("NCHW", "OIHW", "NCHW"))
    ref_relu = jnp.maximum(ref_conv + b.reshape(1, COUT, 1, 1), 0.0)
    ref_stats = ref_relu * 0.0

    assert stats_out.shape == (N, COUT, HO, WO)
    assert relu_out.shape == (N, COUT, HO, WO)
    assert jnp.allclose(relu_out, ref_relu, atol=5e-4, rtol=5e-4)
    assert jnp.allclose(stats_out, ref_stats, atol=1e-6)

    print("KERNEL_OK")
</pallas_src>

<mosaic_0001>
module attributes {stable_mosaic.version = 11 : i64} {
  func.func @_newmod2_kernel(%arg0: memref<2x4x256xf32, #tpu.memory_space<vmem>>, %arg1: memref<9x8x4xf32, #tpu.memory_space<vmem>>, %arg2: memref<8x1xf32, #tpu.memory_space<vmem>>, %arg3: memref<2x8x256xf32, #tpu.memory_space<vmem>>) attributes {dimension_semantics = [], scalar_prefetch = 0 : i64, scratch_operands = 0 : i64, tpu.core_type = #tpu.core_type<tc>} {
    %c0 = arith.constant 0 : index
    %c0_0 = arith.constant 0 : index
    %0 = vector.load %arg2[%c0, %c0_0] : memref<8x1xf32, #tpu.memory_space<vmem>>, vector<8x1xf32>
    %c0_1 = arith.constant 0 : index
    %c0_2 = arith.constant 0 : index
    %c0_3 = arith.constant 0 : index
    %1 = vector.load %arg0[%c0_1, %c0_2, %c0_3] : memref<2x4x256xf32, #tpu.memory_space<vmem>>, vector<1x4x256xf32>
    %2 = vector.shape_cast %1 : vector<1x4x256xf32> to vector<4x256xf32>
    %cst = arith.constant 0.000000e+00 : f32
    %3 = vector.broadcast %cst : f32 to vector<8x256xf32>
    %c0_4 = arith.constant 0 : index
    %c0_5 = arith.constant 0 : index
    %c0_6 = arith.constant 0 : index
    %4 = vector.load %arg1[%c0_4, %c0_5, %c0_6] : memref<9x8x4xf32, #tpu.memory_space<vmem>>, vector<1x8x4xf32>
    %5 = vector.shape_cast %4 : vector<1x8x4xf32> to vector<8x4xf32>
    %cst_7 = arith.constant dense<0.000000e+00> : vector<8x256xf32>
    %6 = tpu.matmul %5, %2, %cst_7 {dimension_numbers = #tpu.dot_dimension_numbers<[1], [0], [0], [1], [0, 0, 1, 1], [], []>} : vector<8x4xf32>, vector<4x256xf32>, vector<8x256xf32> -> vector<8x256xf32>
    %7 = arith.addf %3, %6 : vector<8x256xf32>
    %c255_i32 = arith.constant 255 : i32
    %8 = tpu.dynamic_rotate %2 by %c255_i32 dim 1 : vector<4x256xf32>, i32 -> vector<4x256xf32>
    %c1 = arith.constant 1 : index
    %c0_8 = arith.constant 0 : index
    %c0_9 = arith.constant 0 : index
    %9 = vector.load %arg1[%c1, %c0_8, %c0_9] : memref<9x8x4xf32, #tpu.memory_space<vmem>>, vector<1x8x4xf32>
    %10 = vector.shape_cast %9 : vector<1x8x4xf32> to vector<8x4xf32>
    %cst_10 = arith.constant dense<0.000000e+00> : vector<8x256xf32>
    %11 = tpu.matmul %10, %8, %cst_10 {dimension_numbers = #tpu.dot_dimension_numbers<[1], [0], [0], [1], [0, 0, 1, 1], [], []>} : vector<8x4xf32>, vector<4x256xf32>, vector<8x256xf32> -> vector<8x256xf32>
    %12 = arith.addf %7, %11 : vector<8x256xf32>
    %c254_i32 = arith.constant 254 : i32
    %13 = tpu.dynamic_rotate %2 by %c254_i32 dim 1 : vector<4x256xf32>, i32 -> vector<4x256xf32>
    %c2 = arith.constant 2 : index
    %c0_11 = arith.constant 0 : index
    %c0_12 = arith.constant 0 : index
    %14 = vector.load %arg1[%c2, %c0_11, %c0_12] : memref<9x8x4xf32, #tpu.memory_space<vmem>>, vector<1x8x4xf32>
    %15 = vector.shape_cast %14 : vector<1x8x4xf32> to vector<8x4xf32>
    %cst_13 = arith.constant dense<0.000000e+00> : vector<8x256xf32>
    %16 = tpu.matmul %15, %13, %cst_13 {dimension_numbers = #tpu.dot_dimension_numbers<[1], [0], [0], [1], [0, 0, 1, 1], [], []>} : vector<8x4xf32>, vector<4x256xf32>, vector<8x256xf32> -> vector<8x256xf32>
    %17 = arith.addf %12, %16 : vector<8x256xf32>
    %c240_i32 = arith.constant 240 : i32
    %18 = tpu.dynamic_rotate %2 by %c240_i32 dim 1 : vector<4x256xf32>, i32 -> vector<4x256xf32>
    %c3 = arith.constant 3 : index
    %c0_14 = arith.constant 0 : index
    %c0_15 = arith.constant 0 : index
    %19 = vector.load %arg1[%c3, %c0_14, %c0_15] : memref<9x8x4xf32, #tpu.memory_space<vmem>>, vector<1x8x4xf32>
    %20 = vector.shape_cast %19 : vector<1x8x4xf32> to vector<8x4xf32>
    %cst_16 = arith.constant dense<0.000000e+00> : vector<8x256xf32>
    %21 = tpu.matmul %20, %18, %cst_16 {dimension_numbers = #tpu.dot_dimension_numbers<[1], [0], [0], [1], [0, 0, 1, 1], [], []>} : vector<8x4xf32>, vector<4x256xf32>, vector<8x256xf32> -> vector<8x256xf32>
    %22 = arith.addf %17, %21 : vector<8x256xf32>
    %c239_i32 = arith.constant 239 : i32
    %23 = tpu.dynamic_rotate %2 by %c239_i32 dim 1 : vector<4x256xf32>, i32 -> vector<4x256xf32>
    %c4 = arith.constant 4 : index
    %c0_17 = arith.constant 0 : index
    %c0_18 = arith.constant 0 : index
    %24 = vector.load %arg1[%c4, %c0_17, %c0_18] : memref<9x8x4xf32, #tpu.memory_space<vmem>>, vector<1x8x4xf32>
    %25 = vector.shape_cast %24 : vector<1x8x4xf32> to vector<8x4xf32>
    %cst_19 = arith.constant dense<0.000000e+00> : vector<8x256xf32>
    %26 = tpu.matmul %25, %23, %cst_19 {dimension_numbers = #tpu.dot_dimension_numbers<[1], [0], [0], [1], [0, 0, 1, 1], [], []>} : vector<8x4xf32>, vector<4x256xf32>, vector<8x256xf32> -> vector<8x256xf32>
    %27 = arith.addf %22, %26 : vector<8x256xf32>
    %c238_i32 = arith.constant 238 : i32
    %28 = tpu.dynamic_rotate %2 by %c238_i32 dim 1 : vector<4x256xf32>, i32 -> vector<4x256xf32>
    %c5 = arith.constant 5 : index
    %c0_20 = arith.constant 0 : index
    %c0_21 = arith.constant 0 : index
    %29 = vector.load %arg1[%c5, %c0_20, %c0_21] : memref<9x8x4xf32, #tpu.memory_space<vmem>>, vector<1x8x4xf32>
    %30 = vector.shape_cast %29 : vector<1x8x4xf32> to vector<8x4xf32>
    %cst_22 = arith.constant dense<0.000000e+00> : vector<8x256xf32>
    %31 = tpu.matmul %30, %28, %cst_22 {dimension_numbers = #tpu.dot_dimension_numbers<[1], [0], [0], [1], [0, 0, 1, 1], [], []>} : vector<8x4xf32>, vector<4x256xf32>, vector<8x256xf32> -> vector<8x256xf32>
    %32 = arith.addf %27, %31 : vector<8x256xf32>
    %c224_i32 = arith.constant 224 : i32
    %33 = tpu.dynamic_rotate %2 by %c224_i32 dim 1 : vector<4x256xf32>, i32 -> vector<4x256xf32>
    %c6 = arith.constant 6 : index
    %c0_23 = arith.constant 0 : index
    %c0_24 = arith.constant 0 : index
    %34 = vector.load %arg1[%c6, %c0_23, %c0_24] : memref<9x8x4xf32, #tpu.memory_space<vmem>>, vector<1x8x4xf32>
    %35 = vector.shape_cast %34 : vector<1x8x4xf32> to vector<8x4xf32>
    %cst_25 = arith.constant dense<0.000000e+00> : vector<8x256xf32>
    %36 = tpu.matmul %35, %33, %cst_25 {dimension_numbers = #tpu.dot_dimension_numbers<[1], [0], [0], [1], [0, 0, 1, 1], [], []>} : vector<8x4xf32>, vector<4x256xf32>, vector<8x256xf32> -> vector<8x256xf32>
    %37 = arith.addf %32, %36 : vector<8x256xf32>
    %c223_i32 = arith.constant 223 : i32
    %38 = tpu.dynamic_rotate %2 by %c223_i32 dim 1 : vector<4x256xf32>, i32 -> vector<4x256xf32>
    %c7 = arith.constant 7 : index
    %c0_26 = arith.constant 0 : index
    %c0_27 = arith.constant 0 : index
    %39 = vector.load %arg1[%c7, %c0_26, %c0_27] : memref<9x8x4xf32, #tpu.memory_space<vmem>>, vector<1x8x4xf32>
    %40 = vector.shape_cast %39 : vector<1x8x4xf32> to vector<8x4xf32>
    %cst_28 = arith.constant dense<0.000000e+00> : vector<8x256xf32>
    %41 = tpu.matmul %40, %38, %cst_28 {dimension_numbers = #tpu.dot_dimension_numbers<[1], [0], [0], [1], [0, 0, 1, 1], [], []>} : vector<8x4xf32>, vector<4x256xf32>, vector<8x256xf32> -> vector<8x256xf32>
    %42 = arith.addf %37, %41 : vector<8x256xf32>
    %c222_i32 = arith.constant 222 : i32
    %43 = tpu.dynamic_rotate %2 by %c222_i32 dim 1 : vector<4x256xf32>, i32 -> vector<4x256xf32>
    %c8 = arith.constant 8 : index
    %c0_29 = arith.constant 0 : index
    %c0_30 = arith.constant 0 : index
    %44 = vector.load %arg1[%c8, %c0_29, %c0_30] : memref<9x8x4xf32, #tpu.memory_space<vmem>>, vector<1x8x4xf32>
    %45 = vector.shape_cast %44 : vector<1x8x4xf32> to vector<8x4xf32>
    %cst_31 = arith.constant dense<0.000000e+00> : vector<8x256xf32>
    %46 = tpu.matmul %45, %43, %cst_31 {dimension_numbers = #tpu.dot_dimension_numbers<[1], [0], [0], [1], [0, 0, 1, 1], [], []>} : vector<8x4xf32>, vector<4x256xf32>, vector<8x256xf32> -> vector<8x256xf32>
    %47 = arith.addf %42, %46 : vector<8x256xf32>
    %48 = vector.broadcast %0 : vector<8x1xf32> to vector<8x256xf32>
    %49 = arith.addf %47, %48 : vector<8x256xf32>
    %cst_32 = arith.constant 0.000000e+00 : f32
    %50 = vector.broadcast %cst_32 : f32 to vector<8x256xf32>
    %51 = arith.maximumf %49, %50 : vector<8x256xf32>
    %c0_33 = arith.constant 0 : index
    %c0_34 = arith.constant 0 : index
    %c0_35 = arith.constant 0 : index
    %52 = vector.load %arg3[%c0_33, %c0_34, %c0_35] : memref<2x8x256xf32, #tpu.memory_space<vmem>>, vector<1x8x256xf32>
    %53 = vector.shape_cast %52 : vector<1x8x256xf32> to vector<8x256xf32>
    %54 = vector.shape_cast %51 : vector<8x256xf32> to vector<1x8x256xf32>
    tpu.vector_store %arg3[%c0_33, %c0_34, %c0_35], %54 {strides = array<i32>} : memref<2x8x256xf32, #tpu.memory_space<vmem>>, vector<1x8x256xf32>,
    %c1_36 = arith.constant 1 : index
    %c0_37 = arith.constant 0 : index
    %c0_38 = arith.constant 0 : index
    %55 = vector.load %arg0[%c1_36, %c0_37, %c0_38] : memref<2x4x256xf32, #tpu.memory_space<vmem>>, vector<1x4x256xf32>
    %56 = vector.shape_cast %55 : vector<1x4x256xf32> to vector<4x256xf32>
    %cst_39 = arith.constant 0.000000e+00 : f32
    %57 = vector.broadcast %cst_39 : f32 to vector<8x256xf32>
    %c0_40 = arith.constant 0 : index
    %c0_41 = arith.constant 0 : index
    %c0_42 = arith.constant 0 : index
    %58 = vector.load %arg1[%c0_40, %c0_41, %c0_42] : memref<9x8x4xf32, #tpu.memory_space<vmem>>, vector<1x8x4xf32>
    %59 = vector.shape_cast %58 : vector<1x8x4xf32> to vector<8x4xf32>
    %cst_43 = arith.constant dense<0.000000e+00> : vector<8x256xf32>
    %60 = tpu.matmul %59, %56, %cst_43 {dimension_numbers = #tpu.dot_dimension_numbers<[1], [0], [0], [1], [0, 0, 1, 1], [], []>} : vector<8x4xf32>, vector<4x256xf32>, vector<8x256xf32> -> vector<8x256xf32>
    %61 = arith.addf %57, %60 : vector<8x256xf32>
    %c255_i32_44 = arith.constant 255 : i32
    %62 = tpu.dynamic_rotate %56 by %c255_i32_44 dim 1 : vector<4x256xf32>, i32 -> vector<4x256xf32>
    %c1_45 = arith.constant 1 : index
    %c0_46 = arith.constant 0 : index
    %c0_47 = arith.constant 0 : index
    %63 = vector.load %arg1[%c1_45, %c0_46, %c0_47] : memref<9x8x4xf32, #tpu.memory_space<vmem>>, vector<1x8x4xf32>
    %64 = vector.shape_cast %63 : vector<1x8x4xf32> to vector<8x4xf32>
    %cst_48 = arith.constant dense<0.000000e+00> : vector<8x256xf32>
    %65 = tpu.matmul %64, %62, %cst_48 {dimension_numbers = #tpu.dot_dimension_numbers<[1], [0], [0], [1], [0, 0, 1, 1], [], []>} : vector<8x4xf32>, vector<4x256xf32>, vector<8x256xf32> -> vector<8x256xf32>
    %66 = arith.addf %61, %65 : vector<8x256xf32>
    %c254_i32_49 = arith.constant 254 : i32
    %67 = tpu.dynamic_rotate %56 by %c254_i32_49 dim 1 : vector<4x256xf32>, i32 -> vector<4x256xf32>
    %c2_50 = arith.constant 2 : index
    %c0_51 = arith.constant 0 : index
    %c0_52 = arith.constant 0 : index
    %68 = vector.load %arg1[%c2_50, %c0_51, %c0_52] : memref<9x8x4xf32, #tpu.memory_space<vmem>>, vector<1x8x4xf32>
    %69 = vector.shape_cast %68 : vector<1x8x4xf32> to vector<8x4xf32>
    %cst_53 = arith.constant dense<0.000000e+00> : vector<8x256xf32>
    %70 = tpu.matmul %69, %67, %cst_53 {dimension_numbers = #tpu.dot_dimension_numbers<[1], [0], [0], [1], [0, 0, 1, 1], [], []>} : vector<8x4xf32>, vector<4x256xf32>, vector<8x256xf32> -> vector<8x256xf32>
    %71 = arith.addf %66, %70 : vector<8x256xf32>
    %c240_i32_54 = arith.constant 240 : i32
    %72 = tpu.dynamic_rotate %56 by %c240_i32_54 dim 1 : vector<4x256xf32>, i32 -> vector<4x256xf32>
    %c3_55 = arith.constant 3 : index
    %c0_56 = arith.constant 0 : index
    %c0_57 = arith.constant 0 : index
    %73 = vector.load %arg1[%c3_55, %c0_56, %c0_57] : memref<9x8x4xf32, #tpu.memory_space<vmem>>, vector<1x8x4xf32>
    %74 = vector.shape_cast %73 : vector<1x8x4xf32> to vector<8x4xf32>
    %cst_58 = arith.constant dense<0.000000e+00> : vector<8x256xf32>
    %75 = tpu.matmul %74, %72, %cst_58 {dimension_numbers = #tpu.dot_dimension_numbers<[1], [0], [0], [1], [0, 0, 1, 1], [], []>} : vector<8x4xf32>, vector<4x256xf32>, vector<8x256xf32> -> vector<8x256xf32>
    %76 = arith.addf %71, %75 : vector<8x256xf32>
    %c239_i32_59 = arith.constant 239 : i32
    %77 = tpu.dynamic_rotate %56 by %c239_i32_59 dim 1 : vector<4x256xf32>, i32 -> vector<4x256xf32>
    %c4_60 = arith.constant 4 : index
    %c0_61 = arith.constant 0 : index
    %c0_62 = arith.constant 0 : index
    %78 = vector.load %arg1[%c4_60, %c0_61, %c0_62] : memref<9x8x4xf32, #tpu.memory_space<vmem>>, vector<1x8x4xf32>
    %79 = vector.shape_cast %78 : vector<1x8x4xf32> to vector<8x4xf32>
    %cst_63 = arith.constant dense<0.000000e+00> : vector<8x256xf32>
    %80 = tpu.matmul %79, %77, %cst_63 {dimension_numbers = #tpu.dot_dimension_numbers<[1], [0], [0], [1], [0, 0, 1, 1], [], []>} : vector<8x4xf32>, vector<4x256xf32>, vector<8x256xf32> -> vector<8x256xf32>
    %81 = arith.addf %76, %80 : vector<8x256xf32>
    %c238_i32_64 = arith.constant 238 : i32
    %82 = tpu.dynamic_rotate %56 by %c238_i32_64 dim 1 : vector<4x256xf32>, i32 -> vector<4x256xf32>
    %c5_65 = arith.constant 5 : index
    %c0_66 = arith.constant 0 : index
    %c0_67 = arith.constant 0 : index
    %83 = vector.load %arg1[%c5_65, %c0_66, %c0_67] : memref<9x8x4xf32, #tpu.memory_space<vmem>>, vector<1x8x4xf32>
    %84 = vector.shape_cast %83 : vector<1x8x4xf32> to vector<8x4xf32>
    %cst_68 = arith.constant dense<0.000000e+00> : vector<8x256xf32>
    %85 = tpu.matmul %84, %82, %cst_68 {dimension_numbers = #tpu.dot_dimension_numbers<[1], [0], [0], [1], [0, 0, 1, 1], [], []>} : vector<8x4xf32>, vector<4x256xf32>, vector<8x256xf32> -> vector<8x256xf32>
    %86 = arith.addf %81, %85 : vector<8x256xf32>
    %c224_i32_69 = arith.constant 224 : i32
    %87 = tpu.dynamic_rotate %56 by %c224_i32_69 dim 1 : vector<4x256xf32>, i32 -> vector<4x256xf32>
    %c6_70 = arith.constant 6 : index
    %c0_71 = arith.constant 0 : index
    %c0_72 = arith.constant 0 : index
    %88 = vector.load %arg1[%c6_70, %c0_71, %c0_72] : memref<9x8x4xf32, #tpu.memory_space<vmem>>, vector<1x8x4xf32>
    %89 = vector.shape_cast %88 : vector<1x8x4xf32> to vector<8x4xf32>
    %cst_73 = arith.constant dense<0.000000e+00> : vector<8x256xf32>
    %90 = tpu.matmul %89, %87, %cst_73 {dimension_numbers = #tpu.dot_dimension_numbers<[1], [0], [0], [1], [0, 0, 1, 1], [], []>} : vector<8x4xf32>, vector<4x256xf32>, vector<8x256xf32> -> vector<8x256xf32>
    %91 = arith.addf %86, %90 : vector<8x256xf32>
    %c223_i32_74 = arith.constant 223 : i32
    %92 = tpu.dynamic_rotate %56 by %c223_i32_74 dim 1 : vector<4x256xf32>, i32 -> vector<4x256xf32>
    %c7_75 = arith.constant 7 : index
    %c0_76 = arith.constant 0 : index
    %c0_77 = arith.constant 0 : index
    %93 = vector.load %arg1[%c7_75, %c0_76, %c0_77] : memref<9x8x4xf32, #tpu.memory_space<vmem>>, vector<1x8x4xf32>
    %94 = vector.shape_cast %93 : vector<1x8x4xf32> to vector<8x4xf32>
    %cst_78 = arith.constant dense<0.000000e+00> : vector<8x256xf32>
    %95 = tpu.matmul %94, %92, %cst_78 {dimension_numbers = #tpu.dot_dimension_numbers<[1], [0], [0], [1], [0, 0, 1, 1], [], []>} : vector<8x4xf32>, vector<4x256xf32>, vector<8x256xf32> -> vector<8x256xf32>
    %96 = arith.addf %91, %95 : vector<8x256xf32>
    %c222_i32_79 = arith.constant 222 : i32
    %97 = tpu.dynamic_rotate %56 by %c222_i32_79 dim 1 : vector<4x256xf32>, i32 -> vector<4x256xf32>
    %c8_80 = arith.constant 8 : index
    %c0_81 = arith.constant 0 : index
    %c0_82 = arith.constant 0 : index
    %98 = vector.load %arg1[%c8_80, %c0_81, %c0_82] : memref<9x8x4xf32, #tpu.memory_space<vmem>>, vector<1x8x4xf32>
    %99 = vector.shape_cast %98 : vector<1x8x4xf32> to vector<8x4xf32>
    %cst_83 = arith.constant dense<0.000000e+00> : vector<8x256xf32>
    %100 = tpu.matmul %99, %97, %cst_83 {dimension_numbers = #tpu.dot_dimension_numbers<[1], [0], [0], [1], [0, 0, 1, 1], [], []>} : vector<8x4xf32>, vector<4x256xf32>, vector<8x256xf32> -> vector<8x256xf32>
    %101 = arith.addf %96, %100 : vector<8x256xf32>
    %102 = vector.broadcast %0 : vector<8x1xf32> to vector<8x256xf32>
    %103 = arith.addf %101, %102 : vector<8x256xf32>
    %cst_84 = arith.constant 0.000000e+00 : f32
    %104 = vector.broadcast %cst_84 : f32 to vector<8x256xf32>
    %105 = arith.maximumf %103, %104 : vector<8x256xf32>
    %c1_85 = arith.constant 1 : index
    %c0_86 = arith.constant 0 : index
    %c0_87 = arith.constant 0 : index
    %106 = vector.load %arg3[%c1_85, %c0_86, %c0_87] : memref<2x8x256xf32, #tpu.memory_space<vmem>>, vector<1x8x256xf32>
    %107 = vector.shape_cast %106 : vector<1x8x256xf32> to vector<8x256xf32>
    %108 = vector.shape_cast %105 : vector<8x256xf32> to vector<1x8x256xf32>
    tpu.vector_store %arg3[%c1_85, %c0_86, %c0_87], %108 {strides = array<i32>} : memref<2x8x256xf32, #tpu.memory_space<vmem>>, vector<1x8x256xf32>,
    return
  }
}

</mosaic_0001>

<llo_original>
// kernel: newmod2_forward.1
$region0: #{newmod2_forward.1}
  #allocation0 [shape = 'u32[]', space=smem, size = 0x4, offset = 0x4, fixed_abs, tag = 'smem constant byte address 0x4 - core index']
  #allocation1 [shape = 'u32[144,128]{1,0:T(1,128)}', space=vmem, size = 0x12000, scoped, tag = 'internal scratch']
  %s0 = inlined_call_operand.vmem [shape: f32[2,4,256], index: 0, kind: input, shape index: {}]
  %s1 = inlined_call_operand.vmem [shape: f32[9,8,4], index: 1, kind: input, shape index: {}]
  %s2 = inlined_call_operand.vmem [shape: f32[8,1], index: 2, kind: input, shape index: {}]
  %s3 = inlined_call_operand.vmem [shape: f32[2,8,256], index: 3, kind: output, shape index: {}]
  %s4 = sld [smem:[#allocation0]]
  $region22: #{newmod2_forward.1} parent=0
    _
  %s6 = ssub.s32 1, %s4
  %s7 = scalar_select 0, %s6, %s4
  // Predicated region
  $region2: #{newmod2_forward.1} parent=0 // pred_check
    _
  $region3: #{newmod2_forward.1} parent=0 // pred_check_branch
    %9 = sbr.rel (0) target = $region5
  $region4: #{newmod2_forward.1} parent=0 // pred_region
    _
  $region5: #{newmod2_forward.1} parent=0 // pred_fallthru
    _
  // Predicated region
  $region6: #{newmod2_forward.1} parent=0 // pred_check
    _
  $region7: #{newmod2_forward.1} parent=0 // pred_check_branch
    %11 = sbr.rel (0) target = $region9
  $region8: #{newmod2_forward.1} parent=0 // pred_region
    _
  $region9: #{newmod2_forward.1} parent=0 // pred_fallthru
    _
  // Predicated region
  $region10: #{newmod2_forward.1} parent=0 // pred_check
    _
  $region11: #{newmod2_forward.1} parent=0 // pred_check_branch
    %13 = sbr.rel (0) target = $region13
  $region12: #{newmod2_forward.1} parent=0 // pred_region
    _
  $region13: #{newmod2_forward.1} parent=0 // pred_fallthru
    _
  %v14 = vld [vmem:[%s2] sm:$0xff]
  %v15 = vld [vmem:[%s0] sm:$0xff]
  %v16 = vld [vmem:[%s1] sm:$0xff]
  %v18 = vcombine.high %v15, %v15
  %20 = vrot.lane.b32.xlu0 %v15, 127
  %v21 = vpop.permute.xlu0 %20
  %22 = vrot.lane.b32.xlu0 %v18, 127
  %v23 = vpop.permute.xlu0 %22
  %v24 = vlaneseq
  %v25 = vand.u32 %v24, 127
  %vm26 = vcmp.lt.s32.totalorder %v25, 127
  %v27 = vsel %vm26, %v21, %v23
  %v28 = vsel %vm26, %v23, %v21
  %s29 = scalar_lea.vmem %s1, 8
  %v30 = vld [vmem:[%s29] sm:$0xff]
  %vm31 = vcmask 31744
  %v33 = vsel %vm31, %v30, 0
  %vm35 = vcmask 1043456
  %v37 = vsel %vm35, %v27, 0
  %v40 = vsel %vm35, %v28, 0
  %42 = vmatprep.subr.mxu0 %v40
  %43 = vmatpush1.msra.mxu0 %v37
  %44 = vmatprep.subr.mxu0 0.0
  %45 = vmatpush1.msra.mxu0 0.0
  %46 = vmatprep.subr.mxu0 0.0
  %47 = vmatpush1.msra.mxu0 0.0
  %48 = vmatprep.subr.mxu0 0.0
  %49 = vmatpush1.msra.mxu0 0.0
  %50 = vmatprep.subr.mxu0 0.0
  %51 = vmatpush1.msra.mxu0 0.0
  %52 = vmatprep.subr.mxu0 0.0
  %53 = vmatpush1.msra.mxu0 0.0
  %54 = vmatprep.subr.mxu0 0.0
  %55 = vmatpush1.msra.mxu0 0.0
  %56 = vmatprep.subr.mxu0 0.0
  %57 = vmatpush1.msra.mxu0 0.0
  %58 = vmatprep.subr.mxu0 0.0
  %59 = vmatpush1.msra.mxu0 0.0
  %60 = vmatprep.subr.mxu0 0.0
  %61 = vmatpush1.msra.mxu0 0.0
  %62 = vmatprep.subr.mxu0 0.0
  %63 = vmatpush1.msra.mxu0 0.0
  %64 = vmatprep.subr.mxu0 0.0
  %65 = vmatpush1.msra.mxu0 0.0
  %66 = vmatprep.subr.mxu0 0.0
  %67 = vmatpush1.msra.mxu0 0.0
  %68 = vmatprep.subr.mxu0 0.0
  %69 = vmatpush1.msra.mxu0 0.0
  %70 = vmatprep.subr.mxu0 0.0
  %71 = vmatpush1.msra.mxu0 0.0
  %72 = vmatprep.subr.mxu0 0.0
  %73 = vmatpush1.msra.mxu0 0.0
  %74 = vmatprep.subr.mxu0 0.0
  %75 = vmatpush1.msra.mxu0 0.0
  %76 = vmatprep.subr.mxu0 0.0
  %77 = vmatpush1.msra.mxu0 0.0
  %78 = vmatprep.subr.mxu0 0.0
  %79 = vmatpush1.msra.mxu0 0.0
  %80 = vmatprep.subr.mxu0 0.0
  %81 = vmatpush1.msra.mxu0 0.0
  %82 = vmatprep.subr.mxu0 0.0
  %83 = vmatpush1.msra.mxu0 0.0
  %84 = vmatprep.subr.mxu0 0.0
  %85 = vmatpush1.msra.mxu0 0.0
  %86 = vmatprep.subr.mxu0 0.0
  %87 = vmatpush1.msra.mxu0 0.0
  %88 = vmatprep.subr.mxu0 0.0
  %89 = vmatpush1.msra.mxu0 0.0
  %90 = vmatprep.subr.mxu0 0.0
  %91 = vmatpush1.msra.mxu0 0.0
  %92 = vmatprep.subr.mxu0 0.0
  %93 = vmatpush1.msra.mxu0 0.0
  %94 = vmatprep.subr.mxu0 0.0
  %95 = vmatpush1.msra.mxu0 0.0
  %96 = vmatprep.subr.mxu0 0.0
  %97 = vmatpush1.msra.mxu0 0.0
  %98 = vmatprep.subr.mxu0 0.0
  %99 = vmatpush1.msra.mxu0 0.0
  %100 = vmatprep.subr.mxu0 0.0
  %101 = vmatpush1.msra.mxu0 0.0
  %102 = vmatprep.subr.mxu0 0.0
  %103 = vmatpush1.msra.mxu0 0.0
  %104 = vmatprep.subr.mxu0 0.0
  %105 = vmatpush1.msra.mxu0 0.0
  %106 = vmatprep.mubr.f32.mxu0 0.0
  %107 = vmatmul.mubr.f32.gmra.mrb[0].mxu0 %v33
  %v108 = vpop.f32.mrb[0].mxu0
  %v109 = vadd.f32 0.0, %v108
  %v110 = vpop.f32.mrb[0].mxu0
  %v111 = vadd.f32 0.0, %v110
  %112 = vdwg.mxu0
  %v114 = vsel %vm31, %v16, 0
  %v116 = vsel %vm35, %v15, 0
  %v118 = vsel %vm35, %v18, 0
  %120 = vmatprep.subr.mxu0 %v118
  %121 = vmatpush1.msra.mxu0 %v116
  %122 = vmatprep.subr.mxu0 0.0
  %123 = vmatpush1.msra.mxu0 0.0
  %124 = vmatprep.subr.mxu0 0.0
  %125 = vmatpush1.msra.mxu0 0.0
  %126 = vmatprep.subr.mxu0 0.0
  %127 = vmatpush1.msra.mxu0 0.0
  %128 = vmatprep.subr.mxu0 0.0
  %129 = vmatpush1.msra.mxu0 0.0
  %130 = vmatprep.subr.mxu0 0.0
  %131 = vmatpush1.msra.mxu0 0.0
  %132 = vmatprep.subr.mxu0 0.0
  %133 = vmatpush1.msra.mxu0 0.0
  %134 = vmatprep.subr.mxu0 0.0
  %135 = vmatpush1.msra.mxu0 0.0
  %136 = vmatprep.subr.mxu0 0.0
  %137 = vmatpush1.msra.mxu0 0.0
  %138 = vmatprep.subr.mxu0 0.0
  %139 = vmatpush1.msra.mxu0 0.0
  %140 = vmatprep.subr.mxu0 0.0
  %141 = vmatpush1.msra.mxu0 0.0
  %142 = vmatprep.subr.mxu0 0.0
  %143 = vmatpush1.msra.mxu0 0.0
  %144 = vmatprep.subr.mxu0 0.0
  %145 = vmatpush1.msra.mxu0 0.0
  %146 = vmatprep.subr.mxu0 0.0
  %147 = vmatpush1.msra.mxu0 0.0
  %148 = vmatprep.subr.mxu0 0.0
  %149 = vmatpush1.msra.mxu0 0.0
  %150 = vmatprep.subr.mxu0 0.0
  %151 = vmatpush1.msra.mxu0 0.0
  %152 = vmatprep.subr.mxu0 0.0
  %153 = vmatpush1.msra.mxu0 0.0
  %154 = vmatprep.subr.mxu0 0.0
  %155 = vmatpush1.msra.mxu0 0.0
  %156 = vmatprep.subr.mxu0 0.0
  %157 = vmatpush1.msra.mxu0 0.0
  %158 = vmatprep.subr.mxu0 0.0
  %159 = vmatpush1.msra.mxu0 0.0
  %160 = vmatprep.subr.mxu0 0.0
  %161 = vmatpush1.msra.mxu0 0.0
  %162 = vmatprep.subr.mxu0 0.0
  %163 = vmatpush1.msra.mxu0 0.0
  %164 = vmatprep.subr.mxu0 0.0
  %165 = vmatpush1.msra.mxu0 0.0
  %166 = vmatprep.subr.mxu0 0.0
  %167 = vmatpush1.msra.mxu0 0.0
  %168 = vmatprep.subr.mxu0 0.0
  %169 = vmatpush1.msra.mxu0 0.0
  %170 = vmatprep.subr.mxu0 0.0
  %171 = vmatpush1.msra.mxu0 0.0
  %172 = vmatprep.subr.mxu0 0.0
  %173 = vmatpush1.msra.mxu0 0.0
  %174 = vmatprep.subr.mxu0 0.0
  %175 = vmatpush1.msra.mxu0 0.0
  %176 = vmatprep.subr.mxu0 0.0
  %177 = vmatpush1.msra.mxu0 0.0
  %178 = vmatprep.subr.mxu0 0.0
  %179 = vmatpush1.msra.mxu0 0.0
  %180 = vmatprep.subr.mxu0 0.0
  %181 = vmatpush1.msra.mxu0 0.0
  %182 = vmatprep.subr.mxu0 0.0
  %183 = vmatpush1.msra.mxu0 0.0
  %184 = vmatprep.mubr.f32.mxu0 0.0
  %185 = vmatmul.mubr.f32.gmra.mrb[0].mxu0 %v114
  %v186 = vpop.f32.mrb[0].mxu0
  %v187 = vadd.f32 %v109, %v186
  %v188 = vpop.f32.mrb[0].mxu0
  %v189 = vadd.f32 %v111, %v188
  %190 = vdwg.mxu0
  %191 = vrot.lane.b32.xlu0 %v15, 126
  %v192 = vpop.permute.xlu0 %191
  %193 = vrot.lane.b32.xlu0 %v18, 126
  %v194 = vpop.permute.xlu0 %193
  %vm195 = vcmp.lt.s32.totalorder %v25, 126
  %v196 = vsel %vm195, %v192, %v194
  %v197 = vsel %vm195, %v194, %v192
  %s198 = scalar_lea.vmem %s1, 16
  %v199 = vld [vmem:[%s198] sm:$0xff]
  %v201 = vsel %vm31, %v199, 0
  %v204 = vsel %vm35, %v196, 0
  %v207 = vsel %vm35, %v197, 0
  %209 = vmatprep.subr.mxu0 %v207
  %210 = vmatpush1.msra.mxu0 %v204
  %211 = vmatprep.subr.mxu0 0.0
  %212 = vmatpush1.msra.mxu0 0.0
  %213 = vmatprep.subr.mxu0 0.0
  %214 = vmatpush1.msra.mxu0 0.0
  %215 = vmatprep.subr.mxu0 0.0
  %216 = vmatpush1.msra.mxu0 0.0
  %217 = vmatprep.subr.mxu0 0.0
  %218 = vmatpush1.msra.mxu0 0.0
  %219 = vmatprep.subr.mxu0 0.0
  %220 = vmatpush1.msra.mxu0 0.0
  %221 = vmatprep.subr.mxu0 0.0
  %222 = vmatpush1.msra.mxu0 0.0
  %223 = vmatprep.subr.mxu0 0.0
  %224 = vmatpush1.msra.mxu0 0.0
  %225 = vmatprep.subr.mxu0 0.0
  %226 = vmatpush1.msra.mxu0 0.0
  %227 = vmatprep.subr.mxu0 0.0
  %228 = vmatpush1.msra.mxu0 0.0
  %229 = vmatprep.subr.mxu0 0.0
  %230 = vmatpush1.msra.mxu0 0.0
  %231 = vmatprep.subr.mxu0 0.0
  %232 = vmatpush1.msra.mxu0 0.0
  %233 = vmatprep.subr.mxu0 0.0
  %234 = vmatpush1.msra.mxu0 0.0
  %235 = vmatprep.subr.mxu0 0.0
  %236 = vmatpush1.msra.mxu0 0.0
  %237 = vmatprep.subr.mxu0 0.0
  %238 = vmatpush1.msra.mxu0 0.0
  %239 = vmatprep.subr.mxu0 0.0
  %240 = vmatpush1.msra.mxu0 0.0
  %241 = vmatprep.subr.mxu0 0.0
  %242 = vmatpush1.msra.mxu0 0.0
  %243 = vmatprep.subr.mxu0 0.0
  %244 = vmatpush1.msra.mxu0 0.0
  %245 = vmatprep.subr.mxu0 0.0
  %246 = vmatpush1.msra.mxu0 0.0
  %247 = vmatprep.subr.mxu0 0.0
  %248 = vmatpush1.msra.mxu0 0.0
  %249 = vmatprep.subr.mxu0 0.0
  %250 = vmatpush1.msra.mxu0 0.0
  %251 = vmatprep.subr.mxu0 0.0
  %252 = vmatpush1.msra.mxu0 0.0
  %253 = vmatprep.subr.mxu0 0.0
  %254 = vmatpush1.msra.mxu0 0.0
  %255 = vmatprep.subr.mxu0 0.0
  %256 = vmatpush1.msra.mxu0 0.0
  %257 = vmatprep.subr.mxu0 0.0
  %258 = vmatpush1.msra.mxu0 0.0
  %259 = vmatprep.subr.mxu0 0.0
  %260 = vmatpush1.msra.mxu0 0.0
  %261 = vmatprep.subr.mxu0 0.0
  %262 = vmatpush1.msra.mxu0 0.0
  %263 = vmatprep.subr.mxu0 0.0
  %264 = vmatpush1.msra.mxu0 0.0
  %265 = vmatprep.subr.mxu0 0.0
  %266 = vmatpush1.msra.mxu0 0.0
  %267 = vmatprep.subr.mxu0 0.0
  %268 = vmatpush1.msra.mxu0 0.0
  %269 = vmatprep.subr.mxu0 0.0
  %270 = vmatpush1.msra.mxu0 0.0
  %271 = vmatprep.subr.mxu0 0.0
  %272 = vmatpush1.msra.mxu0 0.0
  %273 = vmatprep.mubr.f32.mxu0 0.0
  %274 = vmatmul.mubr.f32.gmra.mrb[0].mxu0 %v201
  %v275 = vpop.f32.mrb[0].mxu0
  %v276 = vadd.f32 0.0, %v275
  %v277 = vpop.f32.mrb[0].mxu0
  %v278 = vadd.f32 0.0, %v277
  %279 = vdwg.mxu0
  %v280 = vadd.f32 %v187, %v276
  %v281 = vadd.f32 %v189, %v278
  %282 = vrot.lane.b32.xlu0 %v15, 112
  %v283 = vpop.permute.xlu0 %282
  %284 = vrot.lane.b32.xlu0 %v18, 112
  %v285 = vpop.permute.xlu0 %284
  %vm286 = vcmp.lt.s32.totalorder %v25, 112
  %v287 = vsel %vm286, %v283, %v285
  %v288 = vsel %vm286, %v285, %v283
  %s289 = scalar_lea.vmem %s1, 24
  %v290 = vld [vmem:[%s289] sm:$0xff]
  %v292 = vsel %vm31, %v290, 0
  %v295 = vsel %vm35, %v287, 0
  %v298 = vsel %vm35, %v288, 0
  %300 = vmatprep.subr.mxu0 %v298
  %301 = vmatpush1.msra.mxu0 %v295
  %302 = vmatprep.subr.mxu0 0.0
  %303 = vmatpush1.msra.mxu0 0.0
  %304 = vmatprep.subr.mxu0 0.0
  %305 = vmatpush1.msra.mxu0 0.0
  %306 = vmatprep.subr.mxu0 0.0
  %307 = vmatpush1.msra.mxu0 0.0
  %308 = vmatprep.subr.mxu0 0.0
  %309 = vmatpush1.msra.mxu0 0.0
  %310 = vmatprep.subr.mxu0 0.0
  %311 = vmatpush1.msra.mxu0 0.0
  %312 = vmatprep.subr.mxu0 0.0
  %313 = vmatpush1.msra.mxu0 0.0
  %314 = vmatprep.subr.mxu0 0.0
  %315 = vmatpush1.msra.mxu0 0.0
  %316 = vmatprep.subr.mxu0 0.0
  %317 = vmatpush1.msra.mxu0 0.0
  %318 = vmatprep.subr.mxu0 0.0
  %319 = vmatpush1.msra.mxu0 0.0
  %320 = vmatprep.subr.mxu0 0.0
  %321 = vmatpush1.msra.mxu0 0.0
  %322 = vmatprep.subr.mxu0 0.0
  %323 = vmatpush1.msra.mxu0 0.0
  %324 = vmatprep.subr.mxu0 0.0
  %325 = vmatpush1.msra.mxu0 0.0
  %326 = vmatprep.subr.mxu0 0.0
  %327 = vmatpush1.msra.mxu0 0.0
  %328 = vmatprep.subr.mxu0 0.0
  %329 = vmatpush1.msra.mxu0 0.0
  %330 = vmatprep.subr.mxu0 0.0
  %331 = vmatpush1.msra.mxu0 0.0
  %332 = vmatprep.subr.mxu0 0.0
  %333 = vmatpush1.msra.mxu0 0.0
  %334 = vmatprep.subr.mxu0 0.0
  %335 = vmatpush1.msra.mxu0 0.0
  %336 = vmatprep.subr.mxu0 0.0
  %337 = vmatpush1.msra.mxu0 0.0
  %338 = vmatprep.subr.mxu0 0.0
  %339 = vmatpush1.msra.mxu0 0.0
  %340 = vmatprep.subr.mxu0 0.0
  %341 = vmatpush1.msra.mxu0 0.0
  %342 = vmatprep.subr.mxu0 0.0
  %343 = vmatpush1.msra.mxu0 0.0
  %344 = vmatprep.subr.mxu0 0.0
  %345 = vmatpush1.msra.mxu0 0.0
  %346 = vmatprep.subr.mxu0 0.0
  %347 = vmatpush1.msra.mxu0 0.0
  %348 = vmatprep.subr.mxu0 0.0
  %349 = vmatpush1.msra.mxu0 0.0
  %350 = vmatprep.subr.mxu0 0.0
  %351 = vmatpush1.msra.mxu0 0.0
  %352 = vmatprep.subr.mxu0 0.0
  %353 = vmatpush1.msra.mxu0 0.0
  %354 = vmatprep.subr.mxu0 0.0
  %355 = vmatpush1.msra.mxu0 0.0
  %356 = vmatprep.subr.mxu0 0.0
  %357 = vmatpush1.msra.mxu0 0.0
  %358 = vmatprep.subr.mxu0 0.0
  %359 = vmatpush1.msra.mxu0 0.0
  %360 = vmatprep.subr.mxu0 0.0
  %361 = vmatpush1.msra.mxu0 0.0
  %362 = vmatprep.subr.mxu0 0.0
  %363 = vmatpush1.msra.mxu0 0.0
  %364 = vmatprep.mubr.f32.mxu0 0.0
  %365 = vmatmul.mubr.f32.gmra.mrb[0].mxu0 %v292
  %v366 = vpop.f32.mrb[0].mxu0
  %v367 = vadd.f32 0.0, %v366
  %v368 = vpop.f32.mrb[0].mxu0
  %v369 = vadd.f32 0.0, %v368
  %370 = vdwg.mxu0
  %v371 = vadd.f32 %v280, %v367
  %v372 = vadd.f32 %v281, %v369
  %373 = vrot.lane.b32.xlu0 %v15, 111
  %v374 = vpop.permute.xlu0 %373
  %375 = vrot.lane.b32.xlu0 %v18, 111
  %v376 = vpop.permute.xlu0 %375
  %vm377 = vcmp.lt.s32.totalorder %v25, 111
  %v378 = vsel %vm377, %v374, %v376
  %v379 = vsel %vm377, %v376, %v374
  %s380 = scalar_lea.vmem %s1, 32
  %v381 = vld [vmem:[%s380] sm:$0xff]
  %v383 = vsel %vm31, %v381, 0
  %v386 = vsel %vm35, %v378, 0
  %v389 = vsel %vm35, %v379, 0
  %391 = vmatprep.subr.mxu0 %v389
  %392 = vmatpush1.msra.mxu0 %v386
  %393 = vmatprep.subr.mxu0 0.0
  %394 = vmatpush1.msra.mxu0 0.0
  %395 = vmatprep.subr.mxu0 0.0
  %396 = vmatpush1.msra.mxu0 0.0
  %397 = vmatprep.subr.mxu0 0.0
  %398 = vmatpush1.msra.mxu0 0.0
  %399 = vmatprep.subr.mxu0 0.0
  %400 = vmatpush1.msra.mxu0 0.0
  %401 = vmatprep.subr.mxu0 0.0
  %402 = vmatpush1.msra.mxu0 0.0
  %403 = vmatprep.subr.mxu0 0.0
  %404 = vmatpush1.msra.mxu0 0.0
  %405 = vmatprep.subr.mxu0 0.0
  %406 = vmatpush1.msra.mxu0 0.0
  %407 = vmatprep.subr.mxu0 0.0
  %408 = vmatpush1.msra.mxu0 0.0
  %409 = vmatprep.subr.mxu0 0.0
  %410 = vmatpush1.msra.mxu0 0.0
  %411 = vmatprep.subr.mxu0 0.0
  %412 = vmatpush1.msra.mxu0 0.0
  %413 = vmatprep.subr.mxu0 0.0
  %414 = vmatpush1.msra.mxu0 0.0
  %415 = vmatprep.subr.mxu0 0.0
  %416 = vmatpush1.msra.mxu0 0.0
  %417 = vmatprep.subr.mxu0 0.0
  %418 = vmatpush1.msra.mxu0 0.0
  %419 = vmatprep.subr.mxu0 0.0
  %420 = vmatpush1.msra.mxu0 0.0
  %421 = vmatprep.subr.mxu0 0.0
  %422 = vmatpush1.msra.mxu0 0.0
  %423 = vmatprep.subr.mxu0 0.0
  %424 = vmatpush1.msra.mxu0 0.0
  %425 = vmatprep.subr.mxu0 0.0
  %426 = vmatpush1.msra.mxu0 0.0
  %427 = vmatprep.subr.mxu0 0.0
  %428 = vmatpush1.msra.mxu0 0.0
  %429 = vmatprep.subr.mxu0 0.0
  %430 = vmatpush1.msra.mxu0 0.0
  %431 = vmatprep.subr.mxu0 0.0
  %432 = vmatpush1.msra.mxu0 0.0
  %433 = vmatprep.subr.mxu0 0.0
  %434 = vmatpush1.msra.mxu0 0.0
  %435 = vmatprep.subr.mxu0 0.0
  %436 = vmatpush1.msra.mxu0 0.0
  %437 = vmatprep.subr.mxu0 0.0
  %438 = vmatpush1.msra.mxu0 0.0
  %439 = vmatprep.subr.mxu0 0.0
  %440 = vmatpush1.msra.mxu0 0.0
  %441 = vmatprep.subr.mxu0 0.0
  %442 = vmatpush1.msra.mxu0 0.0
  %443 = vmatprep.subr.mxu0 0.0
  %444 = vmatpush1.msra.mxu0 0.0
  %445 = vmatprep.subr.mxu0 0.0
  %446 = vmatpush1.msra.mxu0 0.0
  %447 = vmatprep.subr.mxu0 0.0
  %448 = vmatpush1.msra.mxu0 0.0
  %449 = vmatprep.subr.mxu0 0.0
  %450 = vmatpush1.msra.mxu0 0.0
  %451 = vmatprep.subr.mxu0 0.0
  %452 = vmatpush1.msra.mxu0 0.0
  %453 = vmatprep.subr.mxu0 0.0
  %454 = vmatpush1.msra.mxu0 0.0
  %455 = vmatprep.mubr.f32.mxu0 0.0
  %456 = vmatmul.mubr.f32.gmra.mrb[0].mxu0 %v383
  %v457 = vpop.f32.mrb[0].mxu0
  %v458 = vadd.f32 0.0, %v457
  %v459 = vpop.f32.mrb[0].mxu0
  %v460 = vadd.f32 0.0, %v459
  %461 = vdwg.mxu0
  %v462 = vadd.f32 %v371, %v458
  %v463 = vadd.f32 %v372, %v460
  %464 = vrot.lane.b32.xlu0 %v15, 110
  %v465 = vpop.permute.xlu0 %464
  %466 = vrot.lane.b32.xlu0 %v18, 110
  %v467 = vpop.permute.xlu0 %466
  %vm468 = vcmp.lt.s32.totalorder %v25, 110
  %v469 = vsel %vm468, %v465, %v467
  %v470 = vsel %vm468, %v467, %v465
  %s471 = scalar_lea.vmem %s1, 40
  %v472 = vld [vmem:[%s471] sm:$0xff]
  %v474 = vsel %vm31, %v472, 0
  %v477 = vsel %vm35, %v469, 0
  %v480 = vsel %vm35, %v470, 0
  %482 = vmatprep.subr.mxu0 %v480
  %483 = vmatpush1.msra.mxu0 %v477
  %484 = vmatprep.subr.mxu0 0.0
  %485 = vmatpush1.msra.mxu0 0.0
  %486 = vmatprep.subr.mxu0 0.0
  %487 = vmatpush1.msra.mxu0 0.0
  %488 = vmatprep.subr.mxu0 0.0
  %489 = vmatpush1.msra.mxu0 0.0
  %490 = vmatprep.subr.mxu0 0.0
  %491 = vmatpush1.msra.mxu0 0.0
  %492 = vmatprep.subr.mxu0 0.0
  %493 = vmatpush1.msra.mxu0 0.0
  %494 = vmatprep.subr.mxu0 0.0
  %495 = vmatpush1.msra.mxu0 0.0
  %496 = vmatprep.subr.mxu0 0.0
  %497 = vmatpush1.msra.mxu0 0.0
  %498 = vmatprep.subr.mxu0 0.0
  %499 = vmatpush1.msra.mxu0 0.0
  %500 = vmatprep.subr.mxu0 0.0
  %501 = vmatpush1.msra.mxu0 0.0
  %502 = vmatprep.subr.mxu0 0.0
  %503 = vmatpush1.msra.mxu0 0.0
  %504 = vmatprep.subr.mxu0 0.0
  %505 = vmatpush1.msra.mxu0 0.0
  %506 = vmatprep.subr.mxu0 0.0
  %507 = vmatpush1.msra.mxu0 0.0
  %508 = vmatprep.subr.mxu0 0.0
  %509 = vmatpush1.msra.mxu0 0.0
  %510 = vmatprep.subr.mxu0 0.0
  %511 = vmatpush1.msra.mxu0 0.0
  %512 = vmatprep.subr.mxu0 0.0
  %513 = vmatpush1.msra.mxu0 0.0
  %514 = vmatprep.subr.mxu0 0.0
  %515 = vmatpush1.msra.mxu0 0.0
  %516 = vmatprep.subr.mxu0 0.0
  %517 = vmatpush1.msra.mxu0 0.0
  %518 = vmatprep.subr.mxu0 0.0
  %519 = vmatpush1.msra.mxu0 0.0
  %520 = vmatprep.subr.mxu0 0.0
  %521 = vmatpush1.msra.mxu0 0.0
  %522 = vmatprep.subr.mxu0 0.0
  %523 = vmatpush1.msra.mxu0 0.0
  %524 = vmatprep.subr.mxu0 0.0
  %525 = vmatpush1.msra.mxu0 0.0
  %526 = vmatprep.subr.mxu0 0.0
  %527 = vmatpush1.msra.mxu0 0.0
  %528 = vmatprep.subr.mxu0 0.0
  %529 = vmatpush1.msra.mxu0 0.0
  %530 = vmatprep.subr.mxu0 0.0
  %531 = vmatpush1.msra.mxu0 0.0
  %532 = vmatprep.subr.mxu0 0.0
  %533 = vmatpush1.msra.mxu0 0.0
  %534 = vmatprep.subr.mxu0 0.0
  %535 = vmatpush1.msra.mxu0 0.0
  %536 = vmatprep.subr.mxu0 0.0
  %537 = vmatpush1.msra.mxu0 0.0
  %538 = vmatprep.subr.mxu0 0.0
  %539 = vmatpush1.msra.mxu0 0.0
  %540 = vmatprep.subr.mxu0 0.0
  %541 = vmatpush1.msra.mxu0 0.0
  %542 = vmatprep.subr.mxu0 0.0
  %543 = vmatpush1.msra.mxu0 0.0
  %544 = vmatprep.subr.mxu0 0.0
  %545 = vmatpush1.msra.mxu0 0.0
  %546 = vmatprep.mubr.f32.mxu0 0.0
  %547 = vmatmul.mubr.f32.gmra.mrb[0].mxu0 %v474
  %v548 = vpop.f32.mrb[0].mxu0
  %v549 = vadd.f32 0.0, %v548
  %v550 = vpop.f32.mrb[0].mxu0
  %v551 = vadd.f32 0.0, %v550
  %552 = vdwg.mxu0
  %v553 = vadd.f32 %v462, %v549
  %v554 = vadd.f32 %v463, %v551
  %555 = vrot.lane.b32.xlu0 %v15, 96
  %v556 = vpop.permute.xlu0 %555
  %557 = vrot.lane.b32.xlu0 %v18, 96
  %v558 = vpop.permute.xlu0 %557
  %vm559 = vcmp.lt.s32.totalorder %v25, 96
  %v560 = vsel %vm559, %v556, %v558
  %v561 = vsel %vm559, %v558, %v556
  %s562 = scalar_lea.vmem %s1, 48
  %v563 = vld [vmem:[%s562] sm:$0xff]
  %v565 = vsel %vm31, %v563, 0
  %v568 = vsel %vm35, %v560, 0
  %v571 = vsel %vm35, %v561, 0
  %573 = vmatprep.subr.mxu0 %v571
  %574 = vmatpush1.msra.mxu0 %v568
  %575 = vmatprep.subr.mxu0 0.0
  %576 = vmatpush1.msra.mxu0 0.0
  %577 = vmatprep.subr.mxu0 0.0
  %578 = vmatpush1.msra.mxu0 0.0
  %579 = vmatprep.subr.mxu0 0.0
  %580 = vmatpush1.msra.mxu0 0.0
  %581 = vmatprep.subr.mxu0 0.0
  %582 = vmatpush1.msra.mxu0 0.0
  %583 = vmatprep.subr.mxu0 0.0
  %584 = vmatpush1.msra.mxu0 0.0
  %585 = vmatprep.subr.mxu0 0.0
  %586 = vmatpush1.msra.mxu0 0.0
  %587 = vmatprep.subr.mxu0 0.0
  %588 = vmatpush1.msra.mxu0 0.0
  %589 = vmatprep.subr.mxu0 0.0
  %590 = vmatpush1.msra.mxu0 0.0
  %591 = vmatprep.subr.mxu0 0.0
  %592 = vmatpush1.msra.mxu0 0.0
  %593 = vmatprep.subr.mxu0 0.0
  %594 = vmatpush1.msra.mxu0 0.0
  %595 = vmatprep.subr.mxu0 0.0
  %596 = vmatpush1.msra.mxu0 0.0
  %597 = vmatprep.subr.mxu0 0.0
  %598 = vmatpush1.msra.mxu0 0.0
  %599 = vmatprep.subr.mxu0 0.0
  %600 = vmatpush1.msra.mxu0 0.0
  %601 = vmatprep.subr.mxu0 0.0
  %602 = vmatpush1.msra.mxu0 0.0
  %603 = vmatprep.subr.mxu0 0.0
  %604 = vmatpush1.msra.mxu0 0.0
  %605 = vmatprep.subr.mxu0 0.0
  %606 = vmatpush1.msra.mxu0 0.0
  %607 = vmatprep.subr.mxu0 0.0
  %608 = vmatpush1.msra.mxu0 0.0
  %609 = vmatprep.subr.mxu0 0.0
  %610 = vmatpush1.msra.mxu0 0.0
  %611 = vmatprep.subr.mxu0 0.0
  %612 = vmatpush1.msra.mxu0 0.0
  %613 = vmatprep.subr.mxu0 0.0
  %614 = vmatpush1.msra.mxu0 0.0
  %615 = vmatprep.subr.mxu0 0.0
  %616 = vmatpush1.msra.mxu0 0.0
  %617 = vmatprep.subr.mxu0 0.0
  %618 = vmatpush1.msra.mxu0 0.0
  %619 = vmatprep.subr.mxu0 0.0
  %620 = vmatpush1.msra.mxu0 0.0
  %621 = vmatprep.subr.mxu0 0.0
  %622 = vmatpush1.msra.mxu0 0.0
  %623 = vmatprep.subr.mxu0 0.0
  %624 = vmatpush1.msra.mxu0 0.0
  %625 = vmatprep.subr.mxu0 0.0
  %626 = vmatpush1.msra.mxu0 0.0
  %627 = vmatprep.subr.mxu0 0.0
  %628 = vmatpush1.msra.mxu0 0.0
  %629 = vmatprep.subr.mxu0 0.0
  %630 = vmatpush1.msra.mxu0 0.0
  %631 = vmatprep.subr.mxu0 0.0
  %632 = vmatpush1.msra.mxu0 0.0
  %633 = vmatprep.subr.mxu0 0.0
  %634 = vmatpush1.msra.mxu0 0.0
  %635 = vmatprep.subr.mxu0 0.0
  %636 = vmatpush1.msra.mxu0 0.0
  %637 = vmatprep.mubr.f32.mxu0 0.0
  %638 = vmatmul.mubr.f32.gmra.mrb[0].mxu0 %v565
  %v639 = vpop.f32.mrb[0].mxu0
  %v640 = vadd.f32 0.0, %v639
  %v641 = vpop.f32.mrb[0].mxu0
  %v642 = vadd.f32 0.0, %v641
  %643 = vdwg.mxu0
  %v644 = vadd.f32 %v553, %v640
  %v645 = vadd.f32 %v554, %v642
  %646 = vrot.lane.b32.xlu0 %v15, 95
  %v647 = vpop.permute.xlu0 %646
  %648 = vrot.lane.b32.xlu0 %v18, 95
  %v649 = vpop.permute.xlu0 %648
  %vm650 = vcmp.lt.s32.totalorder %v25, 95
  %v651 = vsel %vm650, %v647, %v649
  %v652 = vsel %vm650, %v649, %v647
  %s653 = scalar_lea.vmem %s1, 56
  %v654 = vld [vmem:[%s653] sm:$0xff]
  %v656 = vsel %vm31, %v654, 0
  %v659 = vsel %vm35, %v651, 0
  %v662 = vsel %vm35, %v652, 0
  %664 = vmatprep.subr.mxu0 %v662
  %665 = vmatpush1.msra.mxu0 %v659
  %666 = vmatprep.subr.mxu0 0.0
  %667 = vmatpush1.msra.mxu0 0.0
  %668 = vmatprep.subr.mxu0 0.0
  %669 = vmatpush1.msra.mxu0 0.0
  %670 = vmatprep.subr.mxu0 0.0
  %671 = vmatpush1.msra.mxu0 0.0
  %672 = vmatprep.subr.mxu0 0.0
  %673 = vmatpush1.msra.mxu0 0.0
  %674 = vmatprep.subr.mxu0 0.0
  %675 = vmatpush1.msra.mxu0 0.0
  %676 = vmatprep.subr.mxu0 0.0
  %677 = vmatpush1.msra.mxu0 0.0
  %678 = vmatprep.subr.mxu0 0.0
  %679 = vmatpush1.msra.mxu0 0.0
  %680 = vmatprep.subr.mxu0 0.0
  %681 = vmatpush1.msra.mxu0 0.0
  %682 = vmatprep.subr.mxu0 0.0
  %683 = vmatpush1.msra.mxu0 0.0
  %684 = vmatprep.subr.mxu0 0.0
  %685 = vmatpush1.msra.mxu0 0.0
  %686 = vmatprep.subr.mxu0 0.0
  %687 = vmatpush1.msra.mxu0 0.0
  %688 = vmatprep.subr.mxu0 0.0
  %689 = vmatpush1.msra.mxu0 0.0
  %690 = vmatprep.subr.mxu0 0.0
  %691 = vmatpush1.msra.mxu0 0.0
  %692 = vmatprep.subr.mxu0 0.0
  %693 = vmatpush1.msra.mxu0 0.0
  %694 = vmatprep.subr.mxu0 0.0
  %695 = vmatpush1.msra.mxu0 0.0
  %696 = vmatprep.subr.mxu0 0.0
  %697 = vmatpush1.msra.mxu0 0.0
  %698 = vmatprep.subr.mxu0 0.0
  %699 = vmatpush1.msra.mxu0 0.0
  %700 = vmatprep.subr.mxu0 0.0
  %701 = vmatpush1.msra.mxu0 0.0
  %702 = vmatprep.subr.mxu0 0.0
  %703 = vmatpush1.msra.mxu0 0.0
  %704 = vmatprep.subr.mxu0 0.0
  %705 = vmatpush1.msra.mxu0 0.0
  %706 = vmatprep.subr.mxu0 0.0
  %707 = vmatpush1.msra.mxu0 0.0
  %708 = vmatprep.subr.mxu0 0.0
  %709 = vmatpush1.msra.mxu0 0.0
  %710 = vmatprep.subr.mxu0 0.0
  %711 = vmatpush1.msra.mxu0 0.0
  %712 = vmatprep.subr.mxu0 0.0
  %713 = vmatpush1.msra.mxu0 0.0
  %714 = vmatprep.subr.mxu0 0.0
  %715 = vmatpush1.msra.mxu0 0.0
  %716 = vmatprep.subr.mxu0 0.0
  %717 = vmatpush1.msra.mxu0 0.0
  %718 = vmatprep.subr.mxu0 0.0
  %719 = vmatpush1.msra.mxu0 0.0
  %720 = vmatprep.subr.mxu0 0.0
  %721 = vmatpush1.msra.mxu0 0.0
  %722 = vmatprep.subr.mxu0 0.0
  %723 = vmatpush1.msra.mxu0 0.0
  %724 = vmatprep.subr.mxu0 0.0
  %725 = vmatpush1.msra.mxu0 0.0
  %726 = vmatprep.subr.mxu0 0.0
  %727 = vmatpush1.msra.mxu0 0.0
  %728 = vmatprep.mubr.f32.mxu0 0.0
  %729 = vmatmul.mubr.f32.gmra.mrb[0].mxu0 %v656
  %v730 = vpop.f32.mrb[0].mxu0
  %v731 = vadd.f32 0.0, %v730
  %v732 = vpop.f32.mrb[0].mxu0
  %v733 = vadd.f32 0.0, %v732
  %734 = vdwg.mxu0
  %v735 = vadd.f32 %v644, %v731
  %v736 = vadd.f32 %v645, %v733
  %737 = vrot.lane.b32.xlu0 %v15, 94
  %v738 = vpop.permute.xlu0 %737
  %739 = vrot.lane.b32.xlu0 %v18, 94
  %v740 = vpop.permute.xlu0 %739
  %vm741 = vcmp.lt.s32.totalorder %v25, 94
  %v742 = vsel %vm741, %v738, %v740
  %v743 = vsel %vm741, %v740, %v738
  %s744 = scalar_lea.vmem %s1, 64
  %v745 = vld [vmem:[%s744] sm:$0xff]
  %v747 = vsel %vm31, %v745, 0
  %v750 = vsel %vm35, %v742, 0
  %v753 = vsel %vm35, %v743, 0
  %755 = vmatprep.subr.mxu0 %v753
  %756 = vmatpush1.msra.mxu0 %v750
  %757 = vmatprep.subr.mxu0 0.0
  %758 = vmatpush1.msra.mxu0 0.0
  %759 = vmatprep.subr.mxu0 0.0
  %760 = vmatpush1.msra.mxu0 0.0
  %761 = vmatprep.subr.mxu0 0.0
  %762 = vmatpush1.msra.mxu0 0.0
  %763 = vmatprep.subr.mxu0 0.0
  %764 = vmatpush1.msra.mxu0 0.0
  %765 = vmatprep.subr.mxu0 0.0
  %766 = vmatpush1.msra.mxu0 0.0
  %767 = vmatprep.subr.mxu0 0.0
  %768 = vmatpush1.msra.mxu0 0.0
  %769 = vmatprep.subr.mxu0 0.0
  %770 = vmatpush1.msra.mxu0 0.0
  %771 = vmatprep.subr.mxu0 0.0
  %772 = vmatpush1.msra.mxu0 0.0
  %773 = vmatprep.subr.mxu0 0.0
  %774 = vmatpush1.msra.mxu0 0.0
  %775 = vmatprep.subr.mxu0 0.0
  %776 = vmatpush1.msra.mxu0 0.0
  %777 = vmatprep.subr.mxu0 0.0
  %778 = vmatpush1.msra.mxu0 0.0
  %779 = vmatprep.subr.mxu0 0.0
  %780 = vmatpush1.msra.mxu0 0.0
  %781 = vmatprep.subr.mxu0 0.0
  %782 = vmatpush1.msra.mxu0 0.0
  %783 = vmatprep.subr.mxu0 0.0
  %784 = vmatpush1.msra.mxu0 0.0
  %785 = vmatprep.subr.mxu0 0.0
  %786 = vmatpush1.msra.mxu0 0.0
  %787 = vmatprep.subr.mxu0 0.0
  %788 = vmatpush1.msra.mxu0 0.0
  %789 = vmatprep.subr.mxu0 0.0
  %790 = vmatpush1.msra.mxu0 0.0
  %791 = vmatprep.subr.mxu0 0.0
  %792 = vmatpush1.msra.mxu0 0.0
  %793 = vmatprep.subr.mxu0 0.0
  %794 = vmatpush1.msra.mxu0 0.0
  %795 = vmatprep.subr.mxu0 0.0
  %796 = vmatpush1.msra.mxu0 0.0
  %797 = vmatprep.subr.mxu0 0.0
  %798 = vmatpush1.msra.mxu0 0.0
  %799 = vmatprep.subr.mxu0 0.0
  %800 = vmatpush1.msra.mxu0 0.0
  %801 = vmatprep.subr.mxu0 0.0
  %802 = vmatpush1.msra.mxu0 0.0
  %803 = vmatprep.subr.mxu0 0.0
  %804 = vmatpush1.msra.mxu0 0.0
  %805 = vmatprep.subr.mxu0 0.0
  %806 = vmatpush1.msra.mxu0 0.0
  %807 = vmatprep.subr.mxu0 0.0
  %808 = vmatpush1.msra.mxu0 0.0
  %809 = vmatprep.subr.mxu0 0.0
  %810 = vmatpush1.msra.mxu0 0.0
  %811 = vmatprep.subr.mxu0 0.0
  %812 = vmatpush1.msra.mxu0 0.0
  %813 = vmatprep.subr.mxu0 0.0
  %814 = vmatpush1.msra.mxu0 0.0
  %815 = vmatprep.subr.mxu0 0.0
  %816 = vmatpush1.msra.mxu0 0.0
  %817 = vmatprep.subr.mxu0 0.0
  %818 = vmatpush1.msra.mxu0 0.0
  %819 = vmatprep.mubr.f32.mxu0 0.0
  %820 = vmatmul.mubr.f32.gmra.mrb[0].mxu0 %v747
  %v821 = vpop.f32.mrb[0].mxu0
  %v822 = vadd.f32 0.0, %v821
  %v823 = vpop.f32.mrb[0].mxu0
  %v824 = vadd.f32 0.0, %v823
  %825 = vdwg.mxu0
  %v826 = vadd.f32 %v735, %v822
  %v827 = vadd.f32 %v736, %v824
  %829 = vset.pattern.permute.xlu0 0
  %830 = vperm.xlu0 %829, %v14
  %v831 = vpop.permute.xlu0 %830
  %v833 = vadd.f32 %v826, %v831
  %v834 = vadd.f32 %v827, %v831
  %v835 = vmax.f32 %v833, 0.0
  %v836 = vmax.f32 %v834, 0.0
  %837 = vst [vmem:[%s3] sm:$0xff] %v835
  %838 = vst [vmem:[%s3 + $0x8] sm:$0xff] %v836
  %s839 = scalar_lea.vmem %s0, 8
  %v840 = vld [vmem:[%s839] sm:$0xff]
  %v841 = vld [vmem:[%s1] sm:$0xff]
  %v843 = vcombine.high %v840, %v840
  %845 = vrot.lane.b32.xlu0 %v840, 127
  %v846 = vpop.permute.xlu0 %845
  %847 = vrot.lane.b32.xlu0 %v843, 127
  %v848 = vpop.permute.xlu0 %847
  %v849 = vsel %vm26, %v846, %v848
  %v850 = vsel %vm26, %v848, %v846
  %v851 = vld [vmem:[%s29] sm:$0xff]
  %v853 = vsel %vm31, %v851, 0
  %v856 = vsel %vm35, %v849, 0
  %v859 = vsel %vm35, %v850, 0
  %861 = vmatprep.subr.mxu0 %v859
  %862 = vmatpush1.msra.mxu0 %v856
  %863 = vmatprep.subr.mxu0 0.0
  %864 = vmatpush1.msra.mxu0 0.0
  %865 = vmatprep.subr.mxu0 0.0
  %866 = vmatpush1.msra.mxu0 0.0
  %867 = vmatprep.subr.mxu0 0.0
  %868 = vmatpush1.msra.mxu0 0.0
  %869 = vmatprep.subr.mxu0 0.0
  %870 = vmatpush1.msra.mxu0 0.0
  %871 = vmatprep.subr.mxu0 0.0
  %872 = vmatpush1.msra.mxu0 0.0
  %873 = vmatprep.subr.mxu0 0.0
  %874 = vmatpush1.msra.mxu0 0.0
  %875 = vmatprep.subr.mxu0 0.0
  %876 = vmatpush1.msra.mxu0 0.0
  %877 = vmatprep.subr.mxu0 0.0
  %878 = vmatpush1.msra.mxu0 0.0
  %879 = vmatprep.subr.mxu0 0.0
  %880 = vmatpush1.msra.mxu0 0.0
  %881 = vmatprep.subr.mxu0 0.0
  %882 = vmatpush1.msra.mxu0 0.0
  %883 = vmatprep.subr.mxu0 0.0
  %884 = vmatpush1.msra.mxu0 0.0
  %885 = vmatprep.subr.mxu0 0.0
  %886 = vmatpush1.msra.mxu0 0.0
  %887 = vmatprep.subr.mxu0 0.0
  %888 = vmatpush1.msra.mxu0 0.0
  %889 = vmatprep.subr.mxu0 0.0
  %890 = vmatpush1.msra.mxu0 0.0
  %891 = vmatprep.subr.mxu0 0.0
  %892 = vmatpush1.msra.mxu0 0.0
  %893 = vmatprep.subr.mxu0 0.0
  %894 = vmatpush1.msra.mxu0 0.0
  %895 = vmatprep.subr.mxu0 0.0
  %896 = vmatpush1.msra.mxu0 0.0
  %897 = vmatprep.subr.mxu0 0.0
  %898 = vmatpush1.msra.mxu0 0.0
  %899 = vmatprep.subr.mxu0 0.0
  %900 = vmatpush1.msra.mxu0 0.0
  %901 = vmatprep.subr.mxu0 0.0
  %902 = vmatpush1.msra.mxu0 0.0
  %903 = vmatprep.subr.mxu0 0.0
  %904 = vmatpush1.msra.mxu0 0.0
  %905 = vmatprep.subr.mxu0 0.0
  %906 = vmatpush1.msra.mxu0 0.0
  %907 = vmatprep.subr.mxu0 0.0
  %908 = vmatpush1.msra.mxu0 0.0
  %909 = vmatprep.subr.mxu0 0.0
  %910 = vmatpush1.msra.mxu0 0.0
  %911 = vmatprep.subr.mxu0 0.0
  %912 = vmatpush1.msra.mxu0 0.0
  %913 = vmatprep.subr.mxu0 0.0
  %914 = vmatpush1.msra.mxu0 0.0
  %915 = vmatprep.subr.mxu0 0.0
  %916 = vmatpush1.msra.mxu0 0.0
  %917 = vmatprep.subr.mxu0 0.0
  %918 = vmatpush1.msra.mxu0 0.0
  %919 = vmatprep.subr.mxu0 0.0
  %920 = vmatpush1.msra.mxu0 0.0
  %921 = vmatprep.subr.mxu0 0.0
  %922 = vmatpush1.msra.mxu0 0.0
  %923 = vmatprep.subr.mxu0 0.0
  %924 = vmatpush1.msra.mxu0 0.0
  %925 = vmatprep.mubr.f32.mxu0 0.0
  %926 = vmatmul.mubr.f32.gmra.mrb[0].mxu0 %v853
  %v927 = vpop.f32.mrb[0].mxu0
  %v928 = vadd.f32 0.0, %v927
  %v929 = vpop.f32.mrb[0].mxu0
  %v930 = vadd.f32 0.0, %v929
  %931 = vdwg.mxu0
  %v933 = vsel %vm31, %v841, 0
  %v935 = vsel %vm35, %v840, 0
  %v937 = vsel %vm35, %v843, 0
  %939 = vmatprep.subr.mxu0 %v937
  %940 = vmatpush1.msra.mxu0 %v935
  %941 = vmatprep.subr.mxu0 0.0
  %942 = vmatpush1.msra.mxu0 0.0
  %943 = vmatprep.subr.mxu0 0.0
  %944 = vmatpush1.msra.mxu0 0.0
  %945 = vmatprep.subr.mxu0 0.0
  %946 = vmatpush1.msra.mxu0 0.0
  %947 = vmatprep.subr.mxu0 0.0
  %948 = vmatpush1.msra.mxu0 0.0
  %949 = vmatprep.subr.mxu0 0.0
  %950 = vmatpush1.msra.mxu0 0.0
  %951 = vmatprep.subr.mxu0 0.0
  %952 = vmatpush1.msra.mxu0 0.0
  %953 = vmatprep.subr.mxu0 0.0
  %954 = vmatpush1.msra.mxu0 0.0
  %955 = vmatprep.subr.mxu0 0.0
  %956 = vmatpush1.msra.mxu0 0.0
  %957 = vmatprep.subr.mxu0 0.0
  %958 = vmatpush1.msra.mxu0 0.0
  %959 = vmatprep.subr.mxu0 0.0
  %960 = vmatpush1.msra.mxu0 0.0
  %961 = vmatprep.subr.mxu0 0.0
  %962 = vmatpush1.msra.mxu0 0.0
  %963 = vmatprep.subr.mxu0 0.0
  %964 = vmatpush1.msra.mxu0 0.0
  %965 = vmatprep.subr.mxu0 0.0
  %966 = vmatpush1.msra.mxu0 0.0
  %967 = vmatprep.subr.mxu0 0.0
  %968 = vmatpush1.msra.mxu0 0.0
  %969 = vmatprep.subr.mxu0 0.0
  %970 = vmatpush1.msra.mxu0 0.0
  %971 = vmatprep.subr.mxu0 0.0
  %972 = vmatpush1.msra.mxu0 0.0
  %973 = vmatprep.subr.mxu0 0.0
  %974 = vmatpush1.msra.mxu0 0.0
  %975 = vmatprep.subr.mxu0 0.0
  %976 = vmatpush1.msra.mxu0 0.0
  %977 = vmatprep.subr.mxu0 0.0
  %978 = vmatpush1.msra.mxu0 0.0
  %979 = vmatprep.subr.mxu0 0.0
  %980 = vmatpush1.msra.mxu0 0.0
  %981 = vmatprep.subr.mxu0 0.0
  %982 = vmatpush1.msra.mxu0 0.0
  %983 = vmatprep.subr.mxu0 0.0
  %984 = vmatpush1.msra.mxu0 0.0
  %985 = vmatprep.subr.mxu0 0.0
  %986 = vmatpush1.msra.mxu0 0.0
  %987 = vmatprep.subr.mxu0 0.0
  %988 = vmatpush1.msra.mxu0 0.0
  %989 = vmatprep.subr.mxu0 0.0
  %990 = vmatpush1.msra.mxu0 0.0
  %991 = vmatprep.subr.mxu0 0.0
  %992 = vmatpush1.msra.mxu0 0.0
  %993 = vmatprep.subr.mxu0 0.0
  %994 = vmatpush1.msra.mxu0 0.0
  %995 = vmatprep.subr.mxu0 0.0
  %996 = vmatpush1.msra.mxu0 0.0
  %997 = vmatprep.subr.mxu0 0.0
  %998 = vmatpush1.msra.mxu0 0.0
  %999 = vmatprep.subr.mxu0 0.0
  %1000 = vmatpush1.msra.mxu0 0.0
  %1001 = vmatprep.subr.mxu0 0.0
  %1002 = vmatpush1.msra.mxu0 0.0
  %1003 = vmatprep.mubr.f32.mxu0 0.0
  %1004 = vmatmul.mubr.f32.gmra.mrb[0].mxu0 %v933
  %v1005 = vpop.f32.mrb[0].mxu0
  %v1006 = vadd.f32 %v928, %v1005
  %v1007 = vpop.f32.mrb[0].mxu0
  %v1008 = vadd.f32 %v930, %v1007
  %1009 = vdwg.mxu0
  %1010 = vrot.lane.b32.xlu0 %v840, 126
  %v1011 = vpop.permute.xlu0 %1010
  %1012 = vrot.lane.b32.xlu0 %v843, 126
  %v1013 = vpop.permute.xlu0 %1012
  %v1014 = vsel %vm195, %v1011, %v1013
  %v1015 = vsel %vm195, %v1013, %v1011
  %v1016 = vld [vmem:[%s198] sm:$0xff]
  %v1018 = vsel %vm31, %v1016, 0
  %v1021 = vsel %vm35, %v1014, 0
  %v1024 = vsel %vm35, %v1015, 0
  %1026 = vmatprep.subr.mxu0 %v1024
  %1027 = vmatpush1.msra.mxu0 %v1021
  %1028 = vmatprep.subr.mxu0 0.0
  %1029 = vmatpush1.msra.mxu0 0.0
  %1030 = vmatprep.subr.mxu0 0.0
  %1031 = vmatpush1.msra.mxu0 0.0
  %1032 = vmatprep.subr.mxu0 0.0
  %1033 = vmatpush1.msra.mxu0 0.0
  %1034 = vmatprep.subr.mxu0 0.0
  %1035 = vmatpush1.msra.mxu0 0.0
  %1036 = vmatprep.subr.mxu0 0.0
  %1037 = vmatpush1.msra.mxu0 0.0
  %1038 = vmatprep.subr.mxu0 0.0
  %1039 = vmatpush1.msra.mxu0 0.0
  %1040 = vmatprep.subr.mxu0 0.0
  %1041 = vmatpush1.msra.mxu0 0.0
  %1042 = vmatprep.subr.mxu0 0.0
  %1043 = vmatpush1.msra.mxu0 0.0
  %1044 = vmatprep.subr.mxu0 0.0
  %1045 = vmatpush1.msra.mxu0 0.0
  %1046 = vmatprep.subr.mxu0 0.0
  %1047 = vmatpush1.msra.mxu0 0.0
  %1048 = vmatprep.subr.mxu0 0.0
  %1049 = vmatpush1.msra.mxu0 0.0
  %1050 = vmatprep.subr.mxu0 0.0
  %1051 = vmatpush1.msra.mxu0 0.0
  %1052 = vmatprep.subr.mxu0 0.0
  %1053 = vmatpush1.msra.mxu0 0.0
  %1054 = vmatprep.subr.mxu0 0.0
  %1055 = vmatpush1.msra.mxu0 0.0
  %1056 = vmatprep.subr.mxu0 0.0
  %1057 = vmatpush1.msra.mxu0 0.0
  %1058 = vmatprep.subr.mxu0 0.0
  %1059 = vmatpush1.msra.mxu0 0.0
  %1060 = vmatprep.subr.mxu0 0.0
  %1061 = vmatpush1.msra.mxu0 0.0
  %1062 = vmatprep.subr.mxu0 0.0
  %1063 = vmatpush1.msra.mxu0 0.0
  %1064 = vmatprep.subr.mxu0 0.0
  %1065 = vmatpush1.msra.mxu0 0.0
  %1066 = vmatprep.subr.mxu0 0.0
  %1067 = vmatpush1.msra.mxu0 0.0
  %1068 = vmatprep.subr.mxu0 0.0
  %1069 = vmatpush1.msra.mxu0 0.0
  %1070 = vmatprep.subr.mxu0 0.0
  %1071 = vmatpush1.msra.mxu0 0.0
  %1072 = vmatprep.subr.mxu0 0.0
  %1073 = vmatpush1.msra.mxu0 0.0
  %1074 = vmatprep.subr.mxu0 0.0
  %1075 = vmatpush1.msra.mxu0 0.0
  %1076 = vmatprep.subr.mxu0 0.0
  %1077 = vmatpush1.msra.mxu0 0.0
  %1078 = vmatprep.subr.mxu0 0.0
  %1079 = vmatpush1.msra.mxu0 0.0
  %1080 = vmatprep.subr.mxu0 0.0
  %1081 = vmatpush1.msra.mxu0 0.0
  %1082 = vmatprep.subr.mxu0 0.0
  %1083 = vmatpush1.msra.mxu0 0.0
  %1084 = vmatprep.subr.mxu0 0.0
  %1085 = vmatpush1.msra.mxu0 0.0
  %1086 = vmatprep.subr.mxu0 0.0
  %1087 = vmatpush1.msra.mxu0 0.0
  %1088 = vmatprep.subr.mxu0 0.0
  %1089 = vmatpush1.msra.mxu0 0.0
  %1090 = vmatprep.mubr.f32.mxu0 0.0
  %1091 = vmatmul.mubr.f32.gmra.mrb[0].mxu0 %v1018
  %v1092 = vpop.f32.mrb[0].mxu0
  %v1093 = vadd.f32 0.0, %v1092
  %v1094 = vpop.f32.mrb[0].mxu0
  %v1095 = vadd.f32 0.0, %v1094
  %1096 = vdwg.mxu0
  %v1097 = vadd.f32 %v1006, %v1093
  %v1098 = vadd.f32 %v1008, %v1095
  %1099 = vrot.lane.b32.xlu0 %v840, 112
  %v1100 = vpop.permute.xlu0 %1099
  %1101 = vrot.lane.b32.xlu0 %v843, 112
  %v1102 = vpop.permute.xlu0 %1101
  %v1103 = vsel %vm286, %v1100, %v1102
  %v1104 = vsel %vm286, %v1102, %v1100
  %v1105 = vld [vmem:[%s289] sm:$0xff]
  %v1107 = vsel %vm31, %v1105, 0
  %v1110 = vsel %vm35, %v1103, 0
  %v1113 = vsel %vm35, %v1104, 0
  %1115 = vmatprep.subr.mxu0 %v1113
  %1116 = vmatpush1.msra.mxu0 %v1110
  %1117 = vmatprep.subr.mxu0 0.0
  %1118 = vmatpush1.msra.mxu0 0.0
  %1119 = vmatprep.subr.mxu0 0.0
  %1120 = vmatpush1.msra.mxu0 0.0
  %1121 = vmatprep.subr.mxu0 0.0
  %1122 = vmatpush1.msra.mxu0 0.0
  %1123 = vmatprep.subr.mxu0 0.0
  %1124 = vmatpush1.msra.mxu0 0.0
  %1125 = vmatprep.subr.mxu0 0.0
  %1126 = vmatpush1.msra.mxu0 0.0
  %1127 = vmatprep.subr.mxu0 0.0
  %1128 = vmatpush1.msra.mxu0 0.0
  %1129 = vmatprep.subr.mxu0 0.0
  %1130 = vmatpush1.msra.mxu0 0.0
  %1131 = vmatprep.subr.mxu0 0.0
  %1132 = vmatpush1.msra.mxu0 0.0
  %1133 = vmatprep.subr.mxu0 0.0
  %1134 = vmatpush1.msra.mxu0 0.0
  %1135 = vmatprep.subr.mxu0 0.0
  %1136 = vmatpush1.msra.mxu0 0.0
  %1137 = vmatprep.subr.mxu0 0.0
  %1138 = vmatpush1.msra.mxu0 0.0
  %1139 = vmatprep.subr.mxu0 0.0
  %1140 = vmatpush1.msra.mxu0 0.0
  %1141 = vmatprep.subr.mxu0 0.0
  %1142 = vmatpush1.msra.mxu0 0.0
  %1143 = vmatprep.subr.mxu0 0.0
  %1144 = vmatpush1.msra.mxu0 0.0
  %1145 = vmatprep.subr.mxu0 0.0
  %1146 = vmatpush1.msra.mxu0 0.0
  %1147 = vmatprep.subr.mxu0 0.0
  %1148 = vmatpush1.msra.mxu0 0.0
  %1149 = vmatprep.subr.mxu0 0.0
  %1150 = vmatpush1.msra.mxu0 0.0
  %1151 = vmatprep.subr.mxu0 0.0
  %1152 = vmatpush1.msra.mxu0 0.0
  %1153 = vmatprep.subr.mxu0 0.0
  %1154 = vmatpush1.msra.mxu0 0.0
  %1155 = vmatprep.subr.mxu0 0.0
  %1156 = vmatpush1.msra.mxu0 0.0
  %1157 = vmatprep.subr.mxu0 0.0
  %1158 = vmatpush1.msra.mxu0 0.0
  %1159 = vmatprep.subr.mxu0 0.0
  %1160 = vmatpush1.msra.mxu0 0.0
  %1161 = vmatprep.subr.mxu0 0.0
  %1162 = vmatpush1.msra.mxu0 0.0
  %1163 = vmatprep.subr.mxu0 0.0
  %1164 = vmatpush1.msra.mxu0 0.0
  %1165 = vmatprep.subr.mxu0 0.0
  %1166 = vmatpush1.msra.mxu0 0.0
  %1167 = vmatprep.subr.mxu0 0.0
  %1168 = vmatpush1.msra.mxu0 0.0
  %1169 = vmatprep.subr.mxu0 0.0
  %1170 = vmatpush1.msra.mxu0 0.0
  %1171 = vmatprep.subr.mxu0 0.0
  %1172 = vmatpush1.msra.mxu0 0.0
  %1173 = vmatprep.subr.mxu0 0.0
  %1174 = vmatpush1.msra.mxu0 0.0
  %1175 = vmatprep.subr.mxu0 0.0
  %1176 = vmatpush1.msra.mxu0 0.0
  %1177 = vmatprep.subr.mxu0 0.0
  %1178 = vmatpush1.msra.mxu0 0.0
  %1179 = vmatprep.mubr.f32.mxu0 0.0
  %1180 = vmatmul.mubr.f32.gmra.mrb[0].mxu0 %v1107
  %v1181 = vpop.f32.mrb[0].mxu0
  %v1182 = vadd.f32 0.0, %v1181
  %v1183 = vpop.f32.mrb[0].mxu0
  %v1184 = vadd.f32 0.0, %v1183
  %1185 = vdwg.mxu0
  %v1186 = vadd.f32 %v1097, %v1182
  %v1187 = vadd.f32 %v1098, %v1184
  %1188 = vrot.lane.b32.xlu0 %v840, 111
  %v1189 = vpop.permute.xlu0 %1188
  %1190 = vrot.lane.b32.xlu0 %v843, 111
  %v1191 = vpop.permute.xlu0 %1190
  %v1192 = vsel %vm377, %v1189, %v1191
  %v1193 = vsel %vm377, %v1191, %v1189
  %v1194 = vld [vmem:[%s380] sm:$0xff]
  %v1196 = vsel %vm31, %v1194, 0
  %v1199 = vsel %vm35, %v1192, 0
  %v1202 = vsel %vm35, %v1193, 0
  %1204 = vmatprep.subr.mxu0 %v1202
  %1205 = vmatpush1.msra.mxu0 %v1199
  %1206 = vmatprep.subr.mxu0 0.0
  %1207 = vmatpush1.msra.mxu0 0.0
  %1208 = vmatprep.subr.mxu0 0.0
  %1209 = vmatpush1.msra.mxu0 0.0
  %1210 = vmatprep.subr.mxu0 0.0
  %1211 = vmatpush1.msra.mxu0 0.0
  %1212 = vmatprep.subr.mxu0 0.0
  %1213 = vmatpush1.msra.mxu0 0.0
  %1214 = vmatprep.subr.mxu0 0.0
  %1215 = vmatpush1.msra.mxu0 0.0
  %1216 = vmatprep.subr.mxu0 0.0
  %1217 = vmatpush1.msra.mxu0 0.0
  %1218 = vmatprep.subr.mxu0 0.0
  %1219 = vmatpush1.msra.mxu0 0.0
  %1220 = vmatprep.subr.mxu0 0.0
  %1221 = vmatpush1.msra.mxu0 0.0
  %1222 = vmatprep.subr.mxu0 0.0
  %1223 = vmatpush1.msra.mxu0 0.0
  %1224 = vmatprep.subr.mxu0 0.0
  %1225 = vmatpush1.msra.mxu0 0.0
  %1226 = vmatprep.subr.mxu0 0.0
  %1227 = vmatpush1.msra.mxu0 0.0
  %1228 = vmatprep.subr.mxu0 0.0
  %1229 = vmatpush1.msra.mxu0 0.0
  %1230 = vmatprep.subr.mxu0 0.0
  %1231 = vmatpush1.msra.mxu0 0.0
  %1232 = vmatprep.subr.mxu0 0.0
  %1233 = vmatpush1.msra.mxu0 0.0
  %1234 = vmatprep.subr.mxu0 0.0
  %1235 = vmatpush1.msra.mxu0 0.0
  %1236 = vmatprep.subr.mxu0 0.0
  %1237 = vmatpush1.msra.mxu0 0.0
  %1238 = vmatprep.subr.mxu0 0.0
  %1239 = vmatpush1.msra.mxu0 0.0
  %1240 = vmatprep.subr.mxu0 0.0
  %1241 = vmatpush1.msra.mxu0 0.0
  %1242 = vmatprep.subr.mxu0 0.0
  %1243 = vmatpush1.msra.mxu0 0.0
  %1244 = vmatprep.subr.mxu0 0.0
  %1245 = vmatpush1.msra.mxu0 0.0
  %1246 = vmatprep.subr.mxu0 0.0
  %1247 = vmatpush1.msra.mxu0 0.0
  %1248 = vmatprep.subr.mxu0 0.0
  %1249 = vmatpush1.msra.mxu0 0.0
  %1250 = vmatprep.subr.mxu0 0.0
  %1251 = vmatpush1.msra.mxu0 0.0
  %1252 = vmatprep.subr.mxu0 0.0
  %1253 = vmatpush1.msra.mxu0 0.0
  %1254 = vmatprep.subr.mxu0 0.0
  %1255 = vmatpush1.msra.mxu0 0.0
  %1256 = vmatprep.subr.mxu0 0.0
  %1257 = vmatpush1.msra.mxu0 0.0
  %1258 = vmatprep.subr.mxu0 0.0
  %1259 = vmatpush1.msra.mxu0 0.0
  %1260 = vmatprep.subr.mxu0 0.0
  %1261 = vmatpush1.msra.mxu0 0.0
  %1262 = vmatprep.subr.mxu0 0.0
  %1263 = vmatpush1.msra.mxu0 0.0
  %1264 = vmatprep.subr.mxu0 0.0
  %1265 = vmatpush1.msra.mxu0 0.0
  %1266 = vmatprep.subr.mxu0 0.0
  %1267 = vmatpush1.msra.mxu0 0.0
  %1268 = vmatprep.mubr.f32.mxu0 0.0
  %1269 = vmatmul.mubr.f32.gmra.mrb[0].mxu0 %v1196
  %v1270 = vpop.f32.mrb[0].mxu0
  %v1271 = vadd.f32 0.0, %v1270
  %v1272 = vpop.f32.mrb[0].mxu0
  %v1273 = vadd.f32 0.0, %v1272
  %1274 = vdwg.mxu0
  %v1275 = vadd.f32 %v1186, %v1271
  %v1276 = vadd.f32 %v1187, %v1273
  %1277 = vrot.lane.b32.xlu0 %v840, 110
  %v1278 = vpop.permute.xlu0 %1277
  %1279 = vrot.lane.b32.xlu0 %v843, 110
  %v1280 = vpop.permute.xlu0 %1279
  %v1281 = vsel %vm468, %v1278, %v1280
  %v1282 = vsel %vm468, %v1280, %v1278
  %v1283 = vld [vmem:[%s471] sm:$0xff]
  %v1285 = vsel %vm31, %v1283, 0
  %v1288 = vsel %vm35, %v1281, 0
  %v1291 = vsel %vm35, %v1282, 0
  %1293 = vmatprep.subr.mxu0 %v1291
  %1294 = vmatpush1.msra.mxu0 %v1288
  %1295 = vmatprep.subr.mxu0 0.0
  %1296 = vmatpush1.msra.mxu0 0.0
  %1297 = vmatprep.subr.mxu0 0.0
  %1298 = vmatpush1.msra.mxu0 0.0
  %1299 = vmatprep.subr.mxu0 0.0
  %1300 = vmatpush1.msra.mxu0 0.0
  %1301 = vmatprep.subr.mxu0 0.0
  %1302 = vmatpush1.msra.mxu0 0.0
  %1303 = vmatprep.subr.mxu0 0.0
  %1304 = vmatpush1.msra.mxu0 0.0
  %1305 = vmatprep.subr.mxu0 0.0
  %1306 = vmatpush1.msra.mxu0 0.0
  %1307 = vmatprep.subr.mxu0 0.0
  %1308 = vmatpush1.msra.mxu0 0.0
  %1309 = vmatprep.subr.mxu0 0.0
  %1310 = vmatpush1.msra.mxu0 0.0
  %1311 = vmatprep.subr.mxu0 0.0
  %1312 = vmatpush1.msra.mxu0 0.0
  %1313 = vmatprep.subr.mxu0 0.0
  %1314 = vmatpush1.msra.mxu0 0.0
  %1315 = vmatprep.subr.mxu0 0.0
  %1316 = vmatpush1.msra.mxu0 0.0
  %1317 = vmatprep.subr.mxu0 0.0
  %1318 = vmatpush1.msra.mxu0 0.0
  %1319 = vmatprep.subr.mxu0 0.0
  %1320 = vmatpush1.msra.mxu0 0.0
  %1321 = vmatprep.subr.mxu0 0.0
  %1322 = vmatpush1.msra.mxu0 0.0
  %1323 = vmatprep.subr.mxu0 0.0
  %1324 = vmatpush1.msra.mxu0 0.0
  %1325 = vmatprep.subr.mxu0 0.0
  %1326 = vmatpush1.msra.mxu0 0.0
  %1327 = vmatprep.subr.mxu0 0.0
  %1328 = vmatpush1.msra.mxu0 0.0
  %1329 = vmatprep.subr.mxu0 0.0
  %1330 = vmatpush1.msra.mxu0 0.0
  %1331 = vmatprep.subr.mxu0 0.0
  %1332 = vmatpush1.msra.mxu0 0.0
  %1333 = vmatprep.subr.mxu0 0.0
  %1334 = vmatpush1.msra.mxu0 0.0
  %1335 = vmatprep.subr.mxu0 0.0
  %1336 = vmatpush1.msra.mxu0 0.0
  %1337 = vmatprep.subr.mxu0 0.0
  %1338 = vmatpush1.msra.mxu0 0.0
  %1339 = vmatprep.subr.mxu0 0.0
  %1340 = vmatpush1.msra.mxu0 0.0
  %1341 = vmatprep.subr.mxu0 0.0
  %1342 = vmatpush1.msra.mxu0 0.0
  %1343 = vmatprep.subr.mxu0 0.0
  %1344 = vmatpush1.msra.mxu0 0.0
  %1345 = vmatprep.subr.mxu0 0.0
  %1346 = vmatpush1.msra.mxu0 0.0
  %1347 = vmatprep.subr.mxu0 0.0
  %1348 = vmatpush1.msra.mxu0 0.0
  %1349 = vmatprep.subr.mxu0 0.0
  %1350 = vmatpush1.msra.mxu0 0.0
  %1351 = vmatprep.subr.mxu0 0.0
  %1352 = vmatpush1.msra.mxu0 0.0
  %1353 = vmatprep.subr.mxu0 0.0
  %1354 = vmatpush1.msra.mxu0 0.0
  %1355 = vmatprep.subr.mxu0 0.0
  %1356 = vmatpush1.msra.mxu0 0.0
  %1357 = vmatprep.mubr.f32.mxu0 0.0
  %1358 = vmatmul.mubr.f32.gmra.mrb[0].mxu0 %v1285
  %v1359 = vpop.f32.mrb[0].mxu0
  %v1360 = vadd.f32 0.0, %v1359
  %v1361 = vpop.f32.mrb[0].mxu0
  %v1362 = vadd.f32 0.0, %v1361
  %1363 = vdwg.mxu0
  %v1364 = vadd.f32 %v1275, %v1360
  %v1365 = vadd.f32 %v1276, %v1362
  %1366 = vrot.lane.b32.xlu0 %v840, 96
  %v1367 = vpop.permute.xlu0 %1366
  %1368 = vrot.lane.b32.xlu0 %v843, 96
  %v1369 = vpop.permute.xlu0 %1368
  %v1370 = vsel %vm559, %v1367, %v1369
  %v1371 = vsel %vm559, %v1369, %v1367
  %v1372 = vld [vmem:[%s562] sm:$0xff]
  %v1374 = vsel %vm31, %v1372, 0
  %v1377 = vsel %vm35, %v1370, 0
  %v1380 = vsel %vm35, %v1371, 0
  %1382 = vmatprep.subr.mxu0 %v1380
  %1383 = vmatpush1.msra.mxu0 %v1377
  %1384 = vmatprep.subr.mxu0 0.0
  %1385 = vmatpush1.msra.mxu0 0.0
  %1386 = vmatprep.subr.mxu0 0.0
  %1387 = vmatpush1.msra.mxu0 0.0
  %1388 = vmatprep.subr.mxu0 0.0
  %1389 = vmatpush1.msra.mxu0 0.0
  %1390 = vmatprep.subr.mxu0 0.0
  %1391 = vmatpush1.msra.mxu0 0.0
  %1392 = vmatprep.subr.mxu0 0.0
  %1393 = vmatpush1.msra.mxu0 0.0
  %1394 = vmatprep.subr.mxu0 0.0
  %1395 = vmatpush1.msra.mxu0 0.0
  %1396 = vmatprep.subr.mxu0 0.0
  %1397 = vmatpush1.msra.mxu0 0.0
  %1398 = vmatprep.subr.mxu0 0.0
  %1399 = vmatpush1.msra.mxu0 0.0
  %1400 = vmatprep.subr.mxu0 0.0
  %1401 = vmatpush1.msra.mxu0 0.0
  %1402 = vmatprep.subr.mxu0 0.0
  %1403 = vmatpush1.msra.mxu0 0.0
  %1404 = vmatprep.subr.mxu0 0.0
  %1405 = vmatpush1.msra.mxu0 0.0
  %1406 = vmatprep.subr.mxu0 0.0
  %1407 = vmatpush1.msra.mxu0 0.0
  %1408 = vmatprep.subr.mxu0 0.0
  %1409 = vmatpush1.msra.mxu0 0.0
  %1410 = vmatprep.subr.mxu0 0.0
  %1411 = vmatpush1.msra.mxu0 0.0
  %1412 = vmatprep.subr.mxu0 0.0
  %1413 = vmatpush1.msra.mxu0 0.0
  %1414 = vmatprep.subr.mxu0 0.0
  %1415 = vmatpush1.msra.mxu0 0.0
  %1416 = vmatprep.subr.mxu0 0.0
  %1417 = vmatpush1.msra.mxu0 0.0
  %1418 = vmatprep.subr.mxu0 0.0
  %1419 = vmatpush1.msra.mxu0 0.0
  %1420 = vmatprep.subr.mxu0 0.0
  %1421 = vmatpush1.msra.mxu0 0.0
  %1422 = vmatprep.subr.mxu0 0.0
  %1423 = vmatpush1.msra.mxu0 0.0
  %1424 = vmatprep.subr.mxu0 0.0
  %1425 = vmatpush1.msra.mxu0 0.0
  %1426 = vmatprep.subr.mxu0 0.0
  %1427 = vmatpush1.msra.mxu0 0.0
  %1428 = vmatprep.subr.mxu0 0.0
  %1429 = vmatpush1.msra.mxu0 0.0
  %1430 = vmatprep.subr.mxu0 0.0
  %1431 = vmatpush1.msra.mxu0 0.0
  %1432 = vmatprep.subr.mxu0 0.0
  %1433 = vmatpush1.msra.mxu0 0.0
  %1434 = vmatprep.subr.mxu0 0.0
  %1435 = vmatpush1.msra.mxu0 0.0
  %1436 = vmatprep.subr.mxu0 0.0
  %1437 = vmatpush1.msra.mxu0 0.0
  %1438 = vmatprep.subr.mxu0 0.0
  %1439 = vmatpush1.msra.mxu0 0.0
  %1440 = vmatprep.subr.mxu0 0.0
  %1441 = vmatpush1.msra.mxu0 0.0
  %1442 = vmatprep.subr.mxu0 0.0
  %1443 = vmatpush1.msra.mxu0 0.0
  %1444 = vmatprep.subr.mxu0 0.0
  %1445 = vmatpush1.msra.mxu0 0.0
  %1446 = vmatprep.mubr.f32.mxu0 0.0
  %1447 = vmatmul.mubr.f32.gmra.mrb[0].mxu0 %v1374
  %v1448 = vpop.f32.mrb[0].mxu0
  %v1449 = vadd.f32 0.0, %v1448
  %v1450 = vpop.f32.mrb[0].mxu0
  %v1451 = vadd.f32 0.0, %v1450
  %1452 = vdwg.mxu0
  %v1453 = vadd.f32 %v1364, %v1449
  %v1454 = vadd.f32 %v1365, %v1451
  %1455 = vrot.lane.b32.xlu0 %v840, 95
  %v1456 = vpop.permute.xlu0 %1455
  %1457 = vrot.lane.b32.xlu0 %v843, 95
  %v1458 = vpop.permute.xlu0 %1457
  %v1459 = vsel %vm650, %v1456, %v1458
  %v1460 = vsel %vm650, %v1458, %v1456
  %v1461 = vld [vmem:[%s653] sm:$0xff]
  %v1463 = vsel %vm31, %v1461, 0
  %v1466 = vsel %vm35, %v1459, 0
  %v1469 = vsel %vm35, %v1460, 0
  %1471 = vmatprep.subr.mxu0 %v1469
  %1472 = vmatpush1.msra.mxu0 %v1466
  %1473 = vmatprep.subr.mxu0 0.0
  %1474 = vmatpush1.msra.mxu0 0.0
  %1475 = vmatprep.subr.mxu0 0.0
  %1476 = vmatpush1.msra.mxu0 0.0
  %1477 = vmatprep.subr.mxu0 0.0
  %1478 = vmatpush1.msra.mxu0 0.0
  %1479 = vmatprep.subr.mxu0 0.0
  %1480 = vmatpush1.msra.mxu0 0.0
  %1481 = vmatprep.subr.mxu0 0.0
  %1482 = vmatpush1.msra.mxu0 0.0
  %1483 = vmatprep.subr.mxu0 0.0
  %1484 = vmatpush1.msra.mxu0 0.0
  %1485 = vmatprep.subr.mxu0 0.0
  %1486 = vmatpush1.msra.mxu0 0.0
  %1487 = vmatprep.subr.mxu0 0.0
  %1488 = vmatpush1.msra.mxu0 0.0
  %1489 = vmatprep.subr.mxu0 0.0
  %1490 = vmatpush1.msra.mxu0 0.0
  %1491 = vmatprep.subr.mxu0 0.0
  %1492 = vmatpush1.msra.mxu0 0.0
  %1493 = vmatprep.subr.mxu0 0.0
  %1494 = vmatpush1.msra.mxu0 0.0
  %1495 = vmatprep.subr.mxu0 0.0
  %1496 = vmatpush1.msra.mxu0 0.0
  %1497 = vmatprep.subr.mxu0 0.0
  %1498 = vmatpush1.msra.mxu0 0.0
  %1499 = vmatprep.subr.mxu0 0.0
  %1500 = vmatpush1.msra.mxu0 0.0
  %1501 = vmatprep.subr.mxu0 0.0
  %1502 = vmatpush1.msra.mxu0 0.0
  %1503 = vmatprep.subr.mxu0 0.0
  %1504 = vmatpush1.msra.mxu0 0.0
  %1505 = vmatprep.subr.mxu0 0.0
  %1506 = vmatpush1.msra.mxu0 0.0
  %1507 = vmatprep.subr.mxu0 0.0
  %1508 = vmatpush1.msra.mxu0 0.0
  %1509 = vmatprep.subr.mxu0 0.0
  %1510 = vmatpush1.msra.mxu0 0.0
  %1511 = vmatprep.subr.mxu0 0.0
  %1512 = vmatpush1.msra.mxu0 0.0
  %1513 = vmatprep.subr.mxu0 0.0
  %1514 = vmatpush1.msra.mxu0 0.0
  %1515 = vmatprep.subr.mxu0 0.0
  %1516 = vmatpush1.msra.mxu0 0.0
  %1517 = vmatprep.subr.mxu0 0.0
  %1518 = vmatpush1.msra.mxu0 0.0
  %1519 = vmatprep.subr.mxu0 0.0
  %1520 = vmatpush1.msra.mxu0 0.0
  %1521 = vmatprep.subr.mxu0 0.0
  %1522 = vmatpush1.msra.mxu0 0.0
  %1523 = vmatprep.subr.mxu0 0.0
  %1524 = vmatpush1.msra.mxu0 0.0
  %1525 = vmatprep.subr.mxu0 0.0
  %1526 = vmatpush1.msra.mxu0 0.0
  %1527 = vmatprep.subr.mxu0 0.0
  %1528 = vmatpush1.msra.mxu0 0.0
  %1529 = vmatprep.subr.mxu0 0.0
  %1530 = vmatpush1.msra.mxu0 0.0
  %1531 = vmatprep.subr.mxu0 0.0
  %1532 = vmatpush1.msra.mxu0 0.0
  %1533 = vmatprep.subr.mxu0 0.0
  %1534 = vmatpush1.msra.mxu0 0.0
  %1535 = vmatprep.mubr.f32.mxu0 0.0
  %1536 = vmatmul.mubr.f32.gmra.mrb[0].mxu0 %v1463
  %v1537 = vpop.f32.mrb[0].mxu0
  %v1538 = vadd.f32 0.0, %v1537
  %v1539 = vpop.f32.mrb[0].mxu0
  %v1540 = vadd.f32 0.0, %v1539
  %1541 = vdwg.mxu0
  %v1542 = vadd.f32 %v1453, %v1538
  %v1543 = vadd.f32 %v1454, %v1540
  %1544 = vrot.lane.b32.xlu0 %v840, 94
  %v1545 = vpop.permute.xlu0 %1544
  %1546 = vrot.lane.b32.xlu0 %v843, 94
  %v1547 = vpop.permute.xlu0 %1546
  %v1548 = vsel %vm741, %v1545, %v1547
  %v1549 = vsel %vm741, %v1547, %v1545
  %v1550 = vld [vmem:[%s744] sm:$0xff]
  %v1552 = vsel %vm31, %v1550, 0
  %v1555 = vsel %vm35, %v1548, 0
  %v1558 = vsel %vm35, %v1549, 0
  %1560 = vmatprep.subr.mxu0 %v1558
  %1561 = vmatpush1.msra.mxu0 %v1555
  %1562 = vmatprep.subr.mxu0 0.0
  %1563 = vmatpush1.msra.mxu0 0.0
  %1564 = vmatprep.subr.mxu0 0.0
  %1565 = vmatpush1.msra.mxu0 0.0
  %1566 = vmatprep.subr.mxu0 0.0
  %1567 = vmatpush1.msra.mxu0 0.0
  %1568 = vmatprep.subr.mxu0 0.0
  %1569 = vmatpush1.msra.mxu0 0.0
  %1570 = vmatprep.subr.mxu0 0.0
  %1571 = vmatpush1.msra.mxu0 0.0
  %1572 = vmatprep.subr.mxu0 0.0
  %1573 = vmatpush1.msra.mxu0 0.0
  %1574 = vmatprep.subr.mxu0 0.0
  %1575 = vmatpush1.msra.mxu0 0.0
  %1576 = vmatprep.subr.mxu0 0.0
  %1577 = vmatpush1.msra.mxu0 0.0
  %1578 = vmatprep.subr.mxu0 0.0
  %1579 = vmatpush1.msra.mxu0 0.0
  %1580 = vmatprep.subr.mxu0 0.0
  %1581 = vmatpush1.msra.mxu0 0.0
  %1582 = vmatprep.subr.mxu0 0.0
  %1583 = vmatpush1.msra.mxu0 0.0
  %1584 = vmatprep.subr.mxu0 0.0
  %1585 = vmatpush1.msra.mxu0 0.0
  %1586 = vmatprep.subr.mxu0 0.0
  %1587 = vmatpush1.msra.mxu0 0.0
  %1588 = vmatprep.subr.mxu0 0.0
  %1589 = vmatpush1.msra.mxu0 0.0
  %1590 = vmatprep.subr.mxu0 0.0
  %1591 = vmatpush1.msra.mxu0 0.0
  %1592 = vmatprep.subr.mxu0 0.0
  %1593 = vmatpush1.msra.mxu0 0.0
  %1594 = vmatprep.subr.mxu0 0.0
  %1595 = vmatpush1.msra.mxu0 0.0
  %1596 = vmatprep.subr.mxu0 0.0
  %1597 = vmatpush1.msra.mxu0 0.0
  %1598 = vmatprep.subr.mxu0 0.0
  %1599 = vmatpush1.msra.mxu0 0.0
  %1600 = vmatprep.subr.mxu0 0.0
  %1601 = vmatpush1.msra.mxu0 0.0
  %1602 = vmatprep.subr.mxu0 0.0
  %1603 = vmatpush1.msra.mxu0 0.0
  %1604 = vmatprep.subr.mxu0 0.0
  %1605 = vmatpush1.msra.mxu0 0.0
  %1606 = vmatprep.subr.mxu0 0.0
  %1607 = vmatpush1.msra.mxu0 0.0
  %1608 = vmatprep.subr.mxu0 0.0
  %1609 = vmatpush1.msra.mxu0 0.0
  %1610 = vmatprep.subr.mxu0 0.0
  %1611 = vmatpush1.msra.mxu0 0.0
  %1612 = vmatprep.subr.mxu0 0.0
  %1613 = vmatpush1.msra.mxu0 0.0
  %1614 = vmatprep.subr.mxu0 0.0
  %1615 = vmatpush1.msra.mxu0 0.0
  %1616 = vmatprep.subr.mxu0 0.0
  %1617 = vmatpush1.msra.mxu0 0.0
  %1618 = vmatprep.subr.mxu0 0.0
  %1619 = vmatpush1.msra.mxu0 0.0
  %1620 = vmatprep.subr.mxu0 0.0
  %1621 = vmatpush1.msra.mxu0 0.0
  %1622 = vmatprep.subr.mxu0 0.0
  %1623 = vmatpush1.msra.mxu0 0.0
  %1624 = vmatprep.mubr.f32.mxu0 0.0
  %1625 = vmatmul.mubr.f32.gmra.mrb[0].mxu0 %v1552
  %v1626 = vpop.f32.mrb[0].mxu0
  %v1627 = vadd.f32 0.0, %v1626
  %v1628 = vpop.f32.mrb[0].mxu0
  %v1629 = vadd.f32 0.0, %v1628
  %1630 = vdwg.mxu0
  %v1631 = vadd.f32 %v1542, %v1627
  %v1632 = vadd.f32 %v1543, %v1629
  %v1633 = vadd.f32 %v1631, %v831
  %v1634 = vadd.f32 %v1632, %v831
  %v1635 = vmax.f32 %v1633, 0.0
  %v1636 = vmax.f32 %v1634, 0.0
  %s1637 = scalar_lea.vmem %s3, 16
  %1638 = vst [vmem:[%s1637] sm:$0xff] %v1635
  %1639 = vst [vmem:[%s1637 + $0x8] sm:$0xff] %v1636
  // Predicated region
  $region14: #{newmod2_forward.1} parent=0 // pred_check
    _
  $region15: #{newmod2_forward.1} parent=0 // pred_check_branch
    %1641 = sbr.rel (0) target = $region17
  $region16: #{newmod2_forward.1} parent=0 // pred_region
    _
  $region17: #{newmod2_forward.1} parent=0 // pred_fallthru
    _
  // Predicated region
  $region18: #{newmod2_forward.1} parent=0 // pred_check
    _
  $region19: #{newmod2_forward.1} parent=0 // pred_check_branch
    %1643 = sbr.rel (0) target = $region21
  $region20: #{newmod2_forward.1} parent=0 // pred_region
    _
  $region21: #{newmod2_forward.1} parent=0 // pred_fallthru
    _

</llo_original>
